<compile_context>
chip_gen: v6e
topology: v6e:2x2x1
jax: 0.10.0
libtpu: 0.0.40
codegen_flags: <defaults>
</compile_context>

<pallas_src>
import math

import jax
import jax.numpy as jnp
from jax import lax
from jax.experimental import pallas as pl
from jax.experimental.pallas import tpu as pltpu

# ---- config (small, consistent with the module) -----------------------------
BATCH = 2
SEQ = 8
HIDDEN = 32
NUM_HEADS = 4
HEAD_DIM = HIDDEN // NUM_HEADS
INTERMEDIATE = 64
EPS = 1e-6
BS = BATCH * SEQ
NEG_BIG = -1e30  # finite "minus infinity" for cross-batch masking

assert SEQ & (SEQ - 1) == 0, "block-diagonal mask uses a shift; SEQ must be pow2"
_SEQ_SHIFT = int(math.log2(SEQ))


def _layer_norm(z, gamma, beta):
    # Matches the PyTorch `layer_norm` class exactly:
    #   mean, std = mean(x), sqrt(mean((x-mean)^2)); (x-mean)/(std+eps)*g + b
    mean = jnp.mean(z, axis=-1, keepdims=True)
    std = jnp.sqrt(jnp.mean((z - mean) ** 2, axis=-1, keepdims=True))
    return (z - mean) / (std + EPS) * gamma + beta


def decoder_block_kernel(
    x_ref,       # [B*S, H]
    wqkvo_ref,   # [H, 4H]   pre-transposed [wq.T | wk.T | wv.T | wo.T]
    w1_ref,      # [H, I]    pre-transposed
    w2_ref,      # [I, H]    pre-transposed
    small_ref,   # [8, I]    row0=b1, row1=b2, row2=g1, row3=be1, row4=g3, row5=be3
    o_ref,       # [B*S, H]
):
    x = x_ref[...]                                   # [BS, H] f32
    wqkvo = wqkvo_ref[...]                           # [H, 4H] — single lane tile
    sp = small_ref[...]                              # [8, I]

    b1 = sp[0:1, :]                                  # [1, I]
    b2 = sp[1:2, 0:HIDDEN]                           # [1, H]
    g1 = sp[2:3, 0:HIDDEN]
    be1 = sp[3:4, 0:HIDDEN]
    g3 = sp[4:5, 0:HIDDEN]
    be3 = sp[5:6, 0:HIDDEN]

    # ---- fused Q/K/V projection (single MXU matmul) -------------------------
    qkv = jnp.dot(x, wqkvo[:, 0:3 * HIDDEN],
                  preferred_element_type=jnp.float32)          # [BS, 3H]
    wo_t = wqkvo[:, 3 * HIDDEN:4 * HIDDEN]                     # [H, H]

    # ---- block-diagonal bias: kill cross-batch attention terms --------------
    row = lax.broadcasted_iota(jnp.int32, (BS, BS), 0)
    col = lax.broadcasted_iota(jnp.int32, (BS, BS), 1)
    same_batch = (row >> _SEQ_SHIFT) == (col >> _SEQ_SHIFT)
    bias = jnp.where(same_batch, jnp.float32(0.0), jnp.float32(NEG_BIG))

    scale = 1.0 / math.sqrt(float(HEAD_DIM))

    # ---- merged-batch attention, heads unrolled ------------------------------
    head_outs = []
    for h in range(NUM_HEADS):
        lo = h * HEAD_DIM
        qh = qkv[:, lo:lo + HEAD_DIM]                            # [BS, HD]
        kh = qkv[:, HIDDEN + lo:HIDDEN + lo + HEAD_DIM]          # [BS, HD]
        vh = qkv[:, 2 * HIDDEN + lo:2 * HIDDEN + lo + HEAD_DIM]  # [BS, HD]
        # q @ k.T via dot_general (contract last dims), no explicit transpose
        s = lax.dot_general(
            qh, kh,
            dimension_numbers=(((1,), (1,)), ((), ())),
            preferred_element_type=jnp.float32,
        ) * scale + bias                                         # [BS, BS]
        s = s - jnp.max(s, axis=-1, keepdims=True)
        p = jnp.exp(s)                                           # cross-batch -> 0.0
        p = p * pl.reciprocal(jnp.sum(p, axis=-1, keepdims=True), approx=True)
        head_outs.append(jnp.dot(p, vh,
                                 preferred_element_type=jnp.float32))  # [BS, HD]

    # single output projection: lane-concat heads, one matmul against wo_t
    attn = jnp.dot(jnp.concatenate(head_outs, axis=1), wo_t,
                   preferred_element_type=jnp.float32)           # [BS, H]

    # residual + layernorm1 (dropout == identity in eval)
    x1 = _layer_norm(x + attn, g1, be1)

    # ---- feed-forward on the flattened slab ----------------------------------
    h1 = jnp.dot(x1, w1_ref[...], preferred_element_type=jnp.float32) + b1
    h1 = jnp.maximum(h1, 0.0)                                    # ReLU
    ff = jnp.dot(h1, w2_ref[...], preferred_element_type=jnp.float32) + b2

    # residual + layernorm3
    o_ref[...] = _layer_norm(x1 + ff, g3, be3)


def pack_decoder_params(params):
    """One-time packing of weights into contraction-ready, DMA-friendly slabs.

    Called once at init (hoisted out of the per-call hot path)."""
    wqkvo = jnp.concatenate(
        [params["wq"].T, params["wk"].T, params["wv"].T, params["wo"].T],
        axis=1)                                                  # [H, 4H] = [32,128]
    small = jnp.zeros((8, INTERMEDIATE), jnp.float32)
    small = small.at[0, :].set(params["b1"])
    small = small.at[1, :HIDDEN].set(params["b2"])
    small = small.at[2, :HIDDEN].set(params["g1"])
    small = small.at[3, :HIDDEN].set(params["be1"])
    small = small.at[4, :HIDDEN].set(params["g3"])
    small = small.at[5, :HIDDEN].set(params["be3"])
    return {
        "wqkvo": wqkvo,
        "w1_t": params["w1"].T,      # [H, I]
        "w2_t": params["w2"].T,      # [I, H]
        "small": small,              # [8, I]
    }


@jax.jit
def decoder_block(x, packed):
    B, S, H = x.shape
    x_flat = x.reshape(B * S, H)

    full = lambda shape: pl.BlockSpec(shape, lambda i: (0, 0))

    out_flat = pl.pallas_call(
        decoder_block_kernel,
        out_shape=jax.ShapeDtypeStruct((B * S, H), jnp.float32),
        grid=(1,),
        in_specs=[
            full((B * S, H)),
            full((H, 4 * H)),
            full((H, INTERMEDIATE)),
            full((INTERMEDIATE, H)),
            full((8, INTERMEDIATE)),
        ],
        out_specs=full((B * S, H)),
        compiler_params=pltpu.CompilerParams(dimension_semantics=("arbitrary",)),
    )(x_flat, packed["wqkvo"], packed["w1_t"], packed["w2_t"], packed["small"])

    return out_flat.reshape(B, S, H)


# ---- pure-JAX reference for verification ------------------------------------
def decoder_block_ref(x, p):
    q = x @ p["wq"].T
    k = x @ p["wk"].T
    v = x @ p["wv"].T
    B, S, H = x.shape

    def split(t):  # [B,S,H] -> [B,nh,S,hd]
        return t.reshape(B, S, NUM_HEADS, HEAD_DIM).transpose(0, 2, 1, 3)

    qh, kh, vh = split(q), split(k), split(v)
    s = jnp.einsum("bhqd,bhkd->bhqk", qh, kh) / math.sqrt(HEAD_DIM)
    a = jax.nn.softmax(s, axis=-1)
    o = jnp.einsum("bhqk,bhkd->bhqd", a, vh).transpose(0, 2, 1, 3).reshape(B, S, H)
    o = o @ p["wo"].T
    x1 = _layer_norm(x + o, p["g1"], p["be1"])
    h1 = jnp.maximum(x1 @ p["w1"].T + p["b1"], 0.0)
    ff = h1 @ p["w2"].T + p["b2"]
    return _layer_norm(x1 + ff, p["g3"], p["be3"])


if __name__ == "__main__":
    key = jax.random.PRNGKey(0)
    keys = jax.random.split(key, 10)
    scale = 0.05
    params = {
        "wq": jax.random.normal(keys[0], (HIDDEN, HIDDEN), jnp.float32) * scale,
        "wk": jax.random.normal(keys[1], (HIDDEN, HIDDEN), jnp.float32) * scale,
        "wv": jax.random.normal(keys[2], (HIDDEN, HIDDEN), jnp.float32) * scale,
        "wo": jax.random.normal(keys[3], (HIDDEN, HIDDEN), jnp.float32) * scale,
        "w1": jax.random.normal(keys[4], (INTERMEDIATE, HIDDEN), jnp.float32) * scale,
        "b1": jax.random.normal(keys[5], (INTERMEDIATE,), jnp.float32) * scale,
        "w2": jax.random.normal(keys[6], (HIDDEN, INTERMEDIATE), jnp.float32) * scale,
        "b2": jax.random.normal(keys[7], (HIDDEN,), jnp.float32) * scale,
        "g1": jnp.ones((HIDDEN,), jnp.float32),
        "be1": jnp.zeros((HIDDEN,), jnp.float32),
        "g3": jnp.ones((HIDDEN,), jnp.float32),
        "be3": jnp.zeros((HIDDEN,), jnp.float32),
    }
    x = jax.random.normal(keys[8], (BATCH, SEQ, HIDDEN), jnp.float32)

    # one-time param packing (hoisted out of the per-call hot path)
    packed = jax.tree_util.tree_map(jax.block_until_ready, pack_decoder_params(params))

    out = decoder_block(x, packed)
    jax.block_until_ready(out)

    ref = decoder_block_ref(x, params)
    assert out.shape == (BATCH, SEQ, HIDDEN)
    # tolerance slightly loosened (5e-4) to cover the approx EUP reciprocal in
    # the softmax; still far tighter than any functional-bug signature.
    assert jnp.allclose(out, ref, rtol=5e-4, atol=5e-4), "mismatch vs JAX reference"
    print("KERNEL_OK")
</pallas_src>

<mosaic_0001>
module attributes {stable_mosaic.version = 11 : i64} {
  func.func @decoder_block_kernel(%arg0: i32, %arg1: memref<16x32xf32, #tpu.memory_space<vmem>>, %arg2: memref<32x128xf32, #tpu.memory_space<vmem>>, %arg3: memref<32x64xf32, #tpu.memory_space<vmem>>, %arg4: memref<64x32xf32, #tpu.memory_space<vmem>>, %arg5: memref<8x64xf32, #tpu.memory_space<vmem>>, %arg6: memref<16x32xf32, #tpu.memory_space<vmem>>) attributes {dimension_semantics = [#tpu.dimension_semantics<arbitrary>], iteration_bounds = array<i64: 1>, scalar_prefetch = 0 : i64, scratch_operands = 0 : i64, tpu.core_type = #tpu.core_type<tc>, window_params = [{pipeline_mode = #tpu.pipeline_mode<synchronous>, transform_indices = @transform_0, window_bounds = array<i64: 16, 32>}, {pipeline_mode = #tpu.pipeline_mode<synchronous>, transform_indices = @transform_1, window_bounds = array<i64: 32, 128>}, {pipeline_mode = #tpu.pipeline_mode<synchronous>, transform_indices = @transform_2, window_bounds = array<i64: 32, 64>}, {pipeline_mode = #tpu.pipeline_mode<synchronous>, transform_indices = @transform_3, window_bounds = array<i64: 64, 32>}, {pipeline_mode = #tpu.pipeline_mode<synchronous>, transform_indices = @transform_4, window_bounds = array<i64: 8, 64>}, {pipeline_mode = #tpu.pipeline_mode<synchronous>, transform_indices = @transform_5, window_bounds = array<i64: 16, 32>}]} {
    %c0 = arith.constant 0 : index
    %c0_0 = arith.constant 0 : index
    %0 = vector.load %arg1[%c0, %c0_0] : memref<16x32xf32, #tpu.memory_space<vmem>>, vector<16x32xf32>
    %c0_1 = arith.constant 0 : index
    %c0_2 = arith.constant 0 : index
    %1 = vector.load %arg2[%c0_1, %c0_2] : memref<32x128xf32, #tpu.memory_space<vmem>>, vector<32x128xf32>
    %c0_3 = arith.constant 0 : index
    %c0_4 = arith.constant 0 : index
    %2 = vector.load %arg5[%c0_3, %c0_4] : memref<8x64xf32, #tpu.memory_space<vmem>>, vector<8x64xf32>
    %3 = vector.extract_strided_slice %2 {offsets = [0, 0], sizes = [1, 64], strides = [1, 1]} : vector<8x64xf32> to vector<1x64xf32>
    %4 = vector.extract_strided_slice %2 {offsets = [1, 0], sizes = [1, 32], strides = [1, 1]} : vector<8x64xf32> to vector<1x32xf32>
    %5 = vector.extract_strided_slice %2 {offsets = [2, 0], sizes = [1, 32], strides = [1, 1]} : vector<8x64xf32> to vector<1x32xf32>
    %6 = vector.extract_strided_slice %2 {offsets = [3, 0], sizes = [1, 32], strides = [1, 1]} : vector<8x64xf32> to vector<1x32xf32>
    %7 = vector.extract_strided_slice %2 {offsets = [4, 0], sizes = [1, 32], strides = [1, 1]} : vector<8x64xf32> to vector<1x32xf32>
    %8 = vector.extract_strided_slice %2 {offsets = [5, 0], sizes = [1, 32], strides = [1, 1]} : vector<8x64xf32> to vector<1x32xf32>
    %9 = vector.extract_strided_slice %1 {offsets = [0, 0], sizes = [32, 96], strides = [1, 1]} : vector<32x128xf32> to vector<32x96xf32>
    %cst = arith.constant dense<0.000000e+00> : vector<16x96xf32>
    %10 = tpu.matmul %0, %9, %cst {dimension_numbers = #tpu.dot_dimension_numbers<[1], [0], [0], [1], [0, 0, 1, 1], [], []>} : vector<16x32xf32>, vector<32x96xf32>, vector<16x96xf32> -> vector<16x96xf32>
    %11 = vector.extract_strided_slice %1 {offsets = [0, 96], sizes = [32, 32], strides = [1, 1]} : vector<32x128xf32> to vector<32x32xf32>
    %12 = tpu.iota {dimensions = array<i32: 0>} : vector<16x16xi32>
    %13 = tpu.iota {dimensions = array<i32: 1>} : vector<16x16xi32>
    %c3_i32 = arith.constant 3 : i32
    %14 = vector.broadcast %c3_i32 : i32 to vector<16x16xi32>
    %15 = arith.shrsi %12, %14 : vector<16x16xi32>
    %c3_i32_5 = arith.constant 3 : i32
    %16 = vector.broadcast %c3_i32_5 : i32 to vector<16x16xi32>
    %17 = arith.shrsi %13, %16 : vector<16x16xi32>
    %18 = arith.cmpi eq, %15, %17 : vector<16x16xi32>
    %cst_6 = arith.constant 0.000000e+00 : f32
    %cst_7 = arith.constant -1.000000e+30 : f32
    %19 = vector.broadcast %cst_6 : f32 to vector<16x16xf32>
    %20 = vector.broadcast %cst_7 : f32 to vector<16x16xf32>
    %21 = arith.select %18, %19, %20 : vector<16x16xi1>, vector<16x16xf32>
    %22 = vector.extract_strided_slice %10 {offsets = [0, 0], sizes = [16, 8], strides = [1, 1]} : vector<16x96xf32> to vector<16x8xf32>
    %23 = vector.extract_strided_slice %10 {offsets = [0, 32], sizes = [16, 8], strides = [1, 1]} : vector<16x96xf32> to vector<16x8xf32>
    %24 = vector.extract_strided_slice %10 {offsets = [0, 64], sizes = [16, 8], strides = [1, 1]} : vector<16x96xf32> to vector<16x8xf32>
    %cst_8 = arith.constant dense<0.000000e+00> : vector<16x16xf32>
    %25 = tpu.matmul %22, %23, %cst_8 {dimension_numbers = #tpu.dot_dimension_numbers<[1], [1], [0], [0], [0, 0, 1, 0], [], []>} : vector<16x8xf32>, vector<16x8xf32>, vector<16x16xf32> -> vector<16x16xf32>
    %cst_9 = arith.constant 0.353553385 : f32
    %26 = vector.broadcast %cst_9 : f32 to vector<16x16xf32>
    %27 = arith.mulf %25, %26 : vector<16x16xf32>
    %28 = arith.addf %27, %21 : vector<16x16xf32>
    %cst_10 = arith.constant dense<0xFF800000> : vector<16xf32>
    %29 = vector.multi_reduction <maximumf>, %28, %cst_10 [1] : vector<16x16xf32> to vector<16xf32>
    %30 = vector.shape_cast %29 : vector<16xf32> to vector<16x1xf32>
    %31 = vector.broadcast %30 : vector<16x1xf32> to vector<16x16xf32>
    %32 = arith.subf %28, %31 : vector<16x16xf32>
    %33 = math.exp %32 : vector<16x16xf32>
    %cst_11 = arith.constant dense<0.000000e+00> : vector<16xf32>
    %34 = vector.multi_reduction <add>, %33, %cst_11 [1] : vector<16x16xf32> to vector<16xf32>
    %35 = vector.shape_cast %34 : vector<16xf32> to vector<16x1xf32>
    %36 = tpu.reciprocal %35 {approx = true} : vector<16x1xf32> -> vector<16x1xf32>
    %37 = vector.broadcast %36 : vector<16x1xf32> to vector<16x16xf32>
    %38 = arith.mulf %33, %37 : vector<16x16xf32>
    %cst_12 = arith.constant dense<0.000000e+00> : vector<16x8xf32>
    %39 = tpu.matmul %38, %24, %cst_12 {dimension_numbers = #tpu.dot_dimension_numbers<[1], [0], [0], [1], [0, 0, 1, 1], [], []>} : vector<16x16xf32>, vector<16x8xf32>, vector<16x8xf32> -> vector<16x8xf32>
    %40 = vector.extract_strided_slice %10 {offsets = [0, 8], sizes = [16, 8], strides = [1, 1]} : vector<16x96xf32> to vector<16x8xf32>
    %41 = vector.extract_strided_slice %10 {offsets = [0, 40], sizes = [16, 8], strides = [1, 1]} : vector<16x96xf32> to vector<16x8xf32>
    %42 = vector.extract_strided_slice %10 {offsets = [0, 72], sizes = [16, 8], strides = [1, 1]} : vector<16x96xf32> to vector<16x8xf32>
    %cst_13 = arith.constant dense<0.000000e+00> : vector<16x16xf32>
    %43 = tpu.matmul %40, %41, %cst_13 {dimension_numbers = #tpu.dot_dimension_numbers<[1], [1], [0], [0], [0, 0, 1, 0], [], []>} : vector<16x8xf32>, vector<16x8xf32>, vector<16x16xf32> -> vector<16x16xf32>
    %cst_14 = arith.constant 0.353553385 : f32
    %44 = vector.broadcast %cst_14 : f32 to vector<16x16xf32>
    %45 = arith.mulf %43, %44 : vector<16x16xf32>
    %46 = arith.addf %45, %21 : vector<16x16xf32>
    %cst_15 = arith.constant dense<0xFF800000> : vector<16xf32>
    %47 = vector.multi_reduction <maximumf>, %46, %cst_15 [1] : vector<16x16xf32> to vector<16xf32>
    %48 = vector.shape_cast %47 : vector<16xf32> to vector<16x1xf32>
    %49 = vector.broadcast %48 : vector<16x1xf32> to vector<16x16xf32>
    %50 = arith.subf %46, %49 : vector<16x16xf32>
    %51 = math.exp %50 : vector<16x16xf32>
    %cst_16 = arith.constant dense<0.000000e+00> : vector<16xf32>
    %52 = vector.multi_reduction <add>, %51, %cst_16 [1] : vector<16x16xf32> to vector<16xf32>
    %53 = vector.shape_cast %52 : vector<16xf32> to vector<16x1xf32>
    %54 = tpu.reciprocal %53 {approx = true} : vector<16x1xf32> -> vector<16x1xf32>
    %55 = vector.broadcast %54 : vector<16x1xf32> to vector<16x16xf32>
    %56 = arith.mulf %51, %55 : vector<16x16xf32>
    %cst_17 = arith.constant dense<0.000000e+00> : vector<16x8xf32>
    %57 = tpu.matmul %56, %42, %cst_17 {dimension_numbers = #tpu.dot_dimension_numbers<[1], [0], [0], [1], [0, 0, 1, 1], [], []>} : vector<16x16xf32>, vector<16x8xf32>, vector<16x8xf32> -> vector<16x8xf32>
    %58 = vector.extract_strided_slice %10 {offsets = [0, 16], sizes = [16, 8], strides = [1, 1]} : vector<16x96xf32> to vector<16x8xf32>
    %59 = vector.extract_strided_slice %10 {offsets = [0, 48], sizes = [16, 8], strides = [1, 1]} : vector<16x96xf32> to vector<16x8xf32>
    %60 = vector.extract_strided_slice %10 {offsets = [0, 80], sizes = [16, 8], strides = [1, 1]} : vector<16x96xf32> to vector<16x8xf32>
    %cst_18 = arith.constant dense<0.000000e+00> : vector<16x16xf32>
    %61 = tpu.matmul %58, %59, %cst_18 {dimension_numbers = #tpu.dot_dimension_numbers<[1], [1], [0], [0], [0, 0, 1, 0], [], []>} : vector<16x8xf32>, vector<16x8xf32>, vector<16x16xf32> -> vector<16x16xf32>
    %cst_19 = arith.constant 0.353553385 : f32
    %62 = vector.broadcast %cst_19 : f32 to vector<16x16xf32>
    %63 = arith.mulf %61, %62 : vector<16x16xf32>
    %64 = arith.addf %63, %21 : vector<16x16xf32>
    %cst_20 = arith.constant dense<0xFF800000> : vector<16xf32>
    %65 = vector.multi_reduction <maximumf>, %64, %cst_20 [1] : vector<16x16xf32> to vector<16xf32>
    %66 = vector.shape_cast %65 : vector<16xf32> to vector<16x1xf32>
    %67 = vector.broadcast %66 : vector<16x1xf32> to vector<16x16xf32>
    %68 = arith.subf %64, %67 : vector<16x16xf32>
    %69 = math.exp %68 : vector<16x16xf32>
    %cst_21 = arith.constant dense<0.000000e+00> : vector<16xf32>
    %70 = vector.multi_reduction <add>, %69, %cst_21 [1] : vector<16x16xf32> to vector<16xf32>
    %71 = vector.shape_cast %70 : vector<16xf32> to vector<16x1xf32>
    %72 = tpu.reciprocal %71 {approx = true} : vector<16x1xf32> -> vector<16x1xf32>
    %73 = vector.broadcast %72 : vector<16x1xf32> to vector<16x16xf32>
    %74 = arith.mulf %69, %73 : vector<16x16xf32>
    %cst_22 = arith.constant dense<0.000000e+00> : vector<16x8xf32>
    %75 = tpu.matmul %74, %60, %cst_22 {dimension_numbers = #tpu.dot_dimension_numbers<[1], [0], [0], [1], [0, 0, 1, 1], [], []>} : vector<16x16xf32>, vector<16x8xf32>, vector<16x8xf32> -> vector<16x8xf32>
    %76 = vector.extract_strided_slice %10 {offsets = [0, 24], sizes = [16, 8], strides = [1, 1]} : vector<16x96xf32> to vector<16x8xf32>
    %77 = vector.extract_strided_slice %10 {offsets = [0, 56], sizes = [16, 8], strides = [1, 1]} : vector<16x96xf32> to vector<16x8xf32>
    %78 = vector.extract_strided_slice %10 {offsets = [0, 88], sizes = [16, 8], strides = [1, 1]} : vector<16x96xf32> to vector<16x8xf32>
    %cst_23 = arith.constant dense<0.000000e+00> : vector<16x16xf32>
    %79 = tpu.matmul %76, %77, %cst_23 {dimension_numbers = #tpu.dot_dimension_numbers<[1], [1], [0], [0], [0, 0, 1, 0], [], []>} : vector<16x8xf32>, vector<16x8xf32>, vector<16x16xf32> -> vector<16x16xf32>
    %cst_24 = arith.constant 0.353553385 : f32
    %80 = vector.broadcast %cst_24 : f32 to vector<16x16xf32>
    %81 = arith.mulf %79, %80 : vector<16x16xf32>
    %82 = arith.addf %81, %21 : vector<16x16xf32>
    %cst_25 = arith.constant dense<0xFF800000> : vector<16xf32>
    %83 = vector.multi_reduction <maximumf>, %82, %cst_25 [1] : vector<16x16xf32> to vector<16xf32>
    %84 = vector.shape_cast %83 : vector<16xf32> to vector<16x1xf32>
    %85 = vector.broadcast %84 : vector<16x1xf32> to vector<16x16xf32>
    %86 = arith.subf %82, %85 : vector<16x16xf32>
    %87 = math.exp %86 : vector<16x16xf32>
    %cst_26 = arith.constant dense<0.000000e+00> : vector<16xf32>
    %88 = vector.multi_reduction <add>, %87, %cst_26 [1] : vector<16x16xf32> to vector<16xf32>
    %89 = vector.shape_cast %88 : vector<16xf32> to vector<16x1xf32>
    %90 = tpu.reciprocal %89 {approx = true} : vector<16x1xf32> -> vector<16x1xf32>
    %91 = vector.broadcast %90 : vector<16x1xf32> to vector<16x16xf32>
    %92 = arith.mulf %87, %91 : vector<16x16xf32>
    %cst_27 = arith.constant dense<0.000000e+00> : vector<16x8xf32>
    %93 = tpu.matmul %92, %78, %cst_27 {dimension_numbers = #tpu.dot_dimension_numbers<[1], [0], [0], [1], [0, 0, 1, 1], [], []>} : vector<16x16xf32>, vector<16x8xf32>, vector<16x8xf32> -> vector<16x8xf32>
    %94 = tpu.concatenate %39, %57, %75, %93 in 1 : vector<16x8xf32>, vector<16x8xf32>, vector<16x8xf32>, vector<16x8xf32> -> vector<16x32xf32>
    %cst_28 = arith.constant dense<0.000000e+00> : vector<16x32xf32>
    %95 = tpu.matmul %94, %11, %cst_28 {dimension_numbers = #tpu.dot_dimension_numbers<[1], [0], [0], [1], [0, 0, 1, 1], [], []>} : vector<16x32xf32>, vector<32x32xf32>, vector<16x32xf32> -> vector<16x32xf32>
    %96 = arith.addf %0, %95 : vector<16x32xf32>
    %cst_29 = arith.constant dense<0.000000e+00> : vector<16xf32>
    %97 = vector.multi_reduction <add>, %96, %cst_29 [1] : vector<16x32xf32> to vector<16xf32>
    %98 = vector.shape_cast %97 : vector<16xf32> to vector<16x1xf32>
    %cst_30 = arith.constant 3.200000e+01 : f32
    %99 = vector.broadcast %cst_30 : f32 to vector<16x1xf32>
    %100 = arith.divf %98, %99 : vector<16x1xf32>
    %101 = vector.broadcast %100 : vector<16x1xf32> to vector<16x32xf32>
    %102 = arith.subf %96, %101 : vector<16x32xf32>
    %103 = arith.mulf %102, %102 : vector<16x32xf32>
    %cst_31 = arith.constant dense<0.000000e+00> : vector<16xf32>
    %104 = vector.multi_reduction <add>, %103, %cst_31 [1] : vector<16x32xf32> to vector<16xf32>
    %105 = vector.shape_cast %104 : vector<16xf32> to vector<16x1xf32>
    %cst_32 = arith.constant 3.200000e+01 : f32
    %106 = vector.broadcast %cst_32 : f32 to vector<16x1xf32>
    %107 = arith.divf %105, %106 : vector<16x1xf32>
    %108 = math.sqrt %107 : vector<16x1xf32>
    %109 = vector.broadcast %100 : vector<16x1xf32> to vector<16x32xf32>
    %110 = arith.subf %96, %109 : vector<16x32xf32>
    %cst_33 = arith.constant 9.99999997E-7 : f32
    %111 = vector.broadcast %cst_33 : f32 to vector<16x1xf32>
    %112 = arith.addf %108, %111 : vector<16x1xf32>
    %113 = vector.broadcast %112 : vector<16x1xf32> to vector<16x32xf32>
    %114 = arith.divf %110, %113 : vector<16x32xf32>
    %115 = vector.broadcast %5 : vector<1x32xf32> to vector<16x32xf32>
    %116 = arith.mulf %114, %115 : vector<16x32xf32>
    %117 = vector.broadcast %6 : vector<1x32xf32> to vector<16x32xf32>
    %118 = arith.addf %116, %117 : vector<16x32xf32>
    %c0_34 = arith.constant 0 : index
    %c0_35 = arith.constant 0 : index
    %119 = vector.load %arg3[%c0_34, %c0_35] : memref<32x64xf32, #tpu.memory_space<vmem>>, vector<32x64xf32>
    %cst_36 = arith.constant dense<0.000000e+00> : vector<16x64xf32>
    %120 = tpu.matmul %118, %119, %cst_36 {dimension_numbers = #tpu.dot_dimension_numbers<[1], [0], [0], [1], [0, 0, 1, 1], [], []>} : vector<16x32xf32>, vector<32x64xf32>, vector<16x64xf32> -> vector<16x64xf32>
    %121 = vector.broadcast %3 : vector<1x64xf32> to vector<16x64xf32>
    %122 = arith.addf %120, %121 : vector<16x64xf32>
    %cst_37 = arith.constant 0.000000e+00 : f32
    %123 = vector.broadcast %cst_37 : f32 to vector<16x64xf32>
    %124 = arith.maximumf %122, %123 : vector<16x64xf32>
    %c0_38 = arith.constant 0 : index
    %c0_39 = arith.constant 0 : index
    %125 = vector.load %arg4[%c0_38, %c0_39] : memref<64x32xf32, #tpu.memory_space<vmem>>, vector<64x32xf32>
    %cst_40 = arith.constant dense<0.000000e+00> : vector<16x32xf32>
    %126 = tpu.matmul %124, %125, %cst_40 {dimension_numbers = #tpu.dot_dimension_numbers<[1], [0], [0], [1], [0, 0, 1, 1], [], []>} : vector<16x64xf32>, vector<64x32xf32>, vector<16x32xf32> -> vector<16x32xf32>
    %127 = vector.broadcast %4 : vector<1x32xf32> to vector<16x32xf32>
    %128 = arith.addf %126, %127 : vector<16x32xf32>
    %129 = arith.addf %118, %128 : vector<16x32xf32>
    %cst_41 = arith.constant dense<0.000000e+00> : vector<16xf32>
    %130 = vector.multi_reduction <add>, %129, %cst_41 [1] : vector<16x32xf32> to vector<16xf32>
    %131 = vector.shape_cast %130 : vector<16xf32> to vector<16x1xf32>
    %cst_42 = arith.constant 3.200000e+01 : f32
    %132 = vector.broadcast %cst_42 : f32 to vector<16x1xf32>
    %133 = arith.divf %131, %132 : vector<16x1xf32>
    %134 = vector.broadcast %133 : vector<16x1xf32> to vector<16x32xf32>
    %135 = arith.subf %129, %134 : vector<16x32xf32>
    %136 = arith.mulf %135, %135 : vector<16x32xf32>
    %cst_43 = arith.constant dense<0.000000e+00> : vector<16xf32>
    %137 = vector.multi_reduction <add>, %136, %cst_43 [1] : vector<16x32xf32> to vector<16xf32>
    %138 = vector.shape_cast %137 : vector<16xf32> to vector<16x1xf32>
    %cst_44 = arith.constant 3.200000e+01 : f32
    %139 = vector.broadcast %cst_44 : f32 to vector<16x1xf32>
    %140 = arith.divf %138, %139 : vector<16x1xf32>
    %141 = math.sqrt %140 : vector<16x1xf32>
    %142 = vector.broadcast %133 : vector<16x1xf32> to vector<16x32xf32>
    %143 = arith.subf %129, %142 : vector<16x32xf32>
    %cst_45 = arith.constant 9.99999997E-7 : f32
    %144 = vector.broadcast %cst_45 : f32 to vector<16x1xf32>
    %145 = arith.addf %141, %144 : vector<16x1xf32>
    %146 = vector.broadcast %145 : vector<16x1xf32> to vector<16x32xf32>
    %147 = arith.divf %143, %146 : vector<16x32xf32>
    %148 = vector.broadcast %7 : vector<1x32xf32> to vector<16x32xf32>
    %149 = arith.mulf %147, %148 : vector<16x32xf32>
    %150 = vector.broadcast %8 : vector<1x32xf32> to vector<16x32xf32>
    %151 = arith.addf %149, %150 : vector<16x32xf32>
    %c0_46 = arith.constant 0 : index
    %c0_47 = arith.constant 0 : index
    %152 = vector.load %arg6[%c0_46, %c0_47] : memref<16x32xf32, #tpu.memory_space<vmem>>, vector<16x32xf32>
    tpu.vector_store %arg6[%c0_46, %c0_47], %151 {strides = array<i32>} : memref<16x32xf32, #tpu.memory_space<vmem>>, vector<16x32xf32>,
    return
  }
  func.func @transform_0(%arg0: i32) -> (i32, i32) {
    %c0_i32 = arith.constant 0 : i32
    %c0_i32_0 = arith.constant 0 : i32
    %c0_i32_1 = arith.constant 0 : i32
    return %c0_i32, %c0_i32_0 : i32, i32
  }
  func.func @transform_1(%arg0: i32) -> (i32, i32) {
    %c0_i32 = arith.constant 0 : i32
    %c0_i32_0 = arith.constant 0 : i32
    %c0_i32_1 = arith.constant 0 : i32
    return %c0_i32, %c0_i32_0 : i32, i32
  }
  func.func @transform_2(%arg0: i32) -> (i32, i32) {
    %c0_i32 = arith.constant 0 : i32
    %c0_i32_0 = arith.constant 0 : i32
    %c0_i32_1 = arith.constant 0 : i32
    return %c0_i32, %c0_i32_0 : i32, i32
  }
  func.func @transform_3(%arg0: i32) -> (i32, i32) {
    %c0_i32 = arith.constant 0 : i32
    %c0_i32_0 = arith.constant 0 : i32
    %c0_i32_1 = arith.constant 0 : i32
    return %c0_i32, %c0_i32_0 : i32, i32
  }
  func.func @transform_4(%arg0: i32) -> (i32, i32) {
    %c0_i32 = arith.constant 0 : i32
    %c0_i32_0 = arith.constant 0 : i32
    %c0_i32_1 = arith.constant 0 : i32
    return %c0_i32, %c0_i32_0 : i32, i32
  }
  func.func @transform_5(%arg0: i32) -> (i32, i32) {
    %c0_i32 = arith.constant 0 : i32
    %c0_i32_0 = arith.constant 0 : i32
    %c0_i32_1 = arith.constant 0 : i32
    return %c0_i32, %c0_i32_0 : i32, i32
  }
}

</mosaic_0001>

<llo_original>
// kernel: decoder_block.1
$region0: #{decoder_block.1}
  #allocation0 [shape = 'u32[]', space=smem, size = 0x4, offset = 0x4, fixed_abs, tag = 'smem constant byte address 0x4 - core index']
  #allocation1 [shape = 'u32[144,128]{1,0:T(1,128)}', space=vmem, size = 0x12000, scoped, tag = 'internal scratch']
  %s0 = inlined_call_operand.vmem [shape: f32[16,32], index: 0, kind: input, shape index: {}]
  %s1 = inlined_call_operand.vmem [shape: f32[32,128], index: 1, kind: input, shape index: {}]
  %s2 = inlined_call_operand.vmem [shape: f32[32,64], index: 2, kind: input, shape index: {}]
  %s3 = inlined_call_operand.vmem [shape: f32[64,32], index: 3, kind: input, shape index: {}]
  %s4 = inlined_call_operand.vmem [shape: f32[8,64], index: 4, kind: input, shape index: {}]
  %s5 = inlined_call_operand.hbm [shape: f32[16,32], index: 5, kind: output, shape index: {}]
  %s6 = sld [smem:[#allocation0]]
  $region30: #{decoder_block.1} parent=0
    _
  %s8 = ssub.s32 1, %s6
  %s9 = scalar_select 0, %s8, %s6
  $region1: #{decoder_block.1} parent=0
    #allocation2 [shape = 'u8[8192]{0}', space=vmem, size = 0x2000, scoped, tag = 'output window, operand 0, single buffered']
    #allocation3 [shape = 's32[1]{0}', space=sflag, size = 0x4, scoped, tag = 'scoped memory for decoder_block.1']
    %10 = vsyncpa [#allocation3], 0
    // Predicated region
    $region2: #{decoder_block.1} parent=1 // pred_check
      _
    $region3: #{decoder_block.1} parent=1 // pred_check_branch
      %12 = sbr.rel (0) target = $region5
    $region4: #{decoder_block.1} parent=1 // pred_region
      _
    $region5: #{decoder_block.1} parent=1 // pred_fallthru
      _
    // Predicated region
    $region6: #{decoder_block.1} parent=1 // pred_check
      _
    $region7: #{decoder_block.1} parent=1 // pred_check_branch
      %14 = sbr.rel (0) target = $region9
    $region8: #{decoder_block.1} parent=1 // pred_region
      _
    $region9: #{decoder_block.1} parent=1 // pred_fallthru
      _
    // Predicated region
    $region10: #{decoder_block.1} parent=1 // pred_check
      _
    $region11: #{decoder_block.1} parent=1 // pred_check_branch
      %16 = sbr.rel (0) target = $region13
    $region12: #{decoder_block.1} parent=1 // pred_region
      _
    $region13: #{decoder_block.1} parent=1 // pred_fallthru
      _
    // Predicated region
    $region14: #{decoder_block.1} parent=1 // pred_check
      _
    $region15: #{decoder_block.1} parent=1 // pred_check_branch
      %18 = sbr.rel (0) target = $region17
    $region16: #{decoder_block.1} parent=1 // pred_region
      _
    $region17: #{decoder_block.1} parent=1 // pred_fallthru
      _
    // Predicated region
    $region18: #{decoder_block.1} parent=1 // pred_check
      _
    $region19: #{decoder_block.1} parent=1 // pred_check_branch
      %20 = sbr.rel (0) target = $region21
    $region20: #{decoder_block.1} parent=1 // pred_region
      _
    $region21: #{decoder_block.1} parent=1 // pred_fallthru
      _
    %v21 = vld [vmem:[%s0] sm:$0xff]
    %v22 = vld [vmem:[%s0 + $0x8] sm:$0xff]
    %v23 = vld [vmem:[%s1] sm:$0xff]
    %v24 = vld [vmem:[%s1 + $0x8] sm:$0xff]
    %v25 = vld [vmem:[%s1 + $0x10] sm:$0xff]
    %v26 = vld [vmem:[%s1 + $0x18] sm:$0xff]
    %v27 = vld [vmem:[%s4] sm:$0xff]
    %vm28 = vcmask 261120
    %v30 = vsel %vm28, %v21, 0
    %v33 = vsel %vm28, %v22, 0
    %35 = vmatprep.subr.mxu0 0.0
    %36 = vmatpush1.msra.mxu0 0.0
    %37 = vmatprep.subr.mxu0 0.0
    %38 = vmatpush1.msra.mxu0 0.0
    %39 = vmatprep.subr.mxu0 0.0
    %40 = vmatpush1.msra.mxu0 0.0
    %41 = vmatprep.subr.mxu0 0.0
    %42 = vmatpush1.msra.mxu0 0.0
    %43 = vmatprep.subr.mxu0 0.0
    %44 = vmatpush1.msra.mxu0 0.0
    %45 = vmatprep.subr.mxu0 0.0
    %46 = vmatpush1.msra.mxu0 0.0
    %47 = vmatprep.subr.mxu0 0.0
    %48 = vmatpush1.msra.mxu0 0.0
    %49 = vmatprep.subr.mxu0 0.0
    %50 = vmatpush1.msra.mxu0 0.0
    %51 = vmatprep.subr.mxu0 0.0
    %52 = vmatpush1.msra.mxu0 0.0
    %53 = vmatprep.subr.mxu0 0.0
    %54 = vmatpush1.msra.mxu0 0.0
    %55 = vmatprep.subr.mxu0 0.0
    %56 = vmatpush1.msra.mxu0 0.0
    %57 = vmatprep.subr.mxu0 0.0
    %58 = vmatpush1.msra.mxu0 0.0
    %59 = vmatprep.subr.mxu0 0.0
    %60 = vmatpush1.msra.mxu0 %v26
    %61 = vmatprep.subr.mxu0 0.0
    %62 = vmatpush1.msra.mxu0 %v25
    %63 = vmatprep.subr.mxu0 0.0
    %64 = vmatpush1.msra.mxu0 %v24
    %65 = vmatprep.subr.mxu0 0.0
    %66 = vmatpush1.msra.mxu0 %v23
    %67 = vmatprep.subr.mxu0 0.0
    %68 = vmatpush2.msra.mxu0 0.0
    %69 = vmatprep.subr.mxu0 0.0
    %70 = vmatpush2.msra.mxu0 0.0
    %71 = vmatprep.subr.mxu0 0.0
    %72 = vmatpush2.msra.mxu0 0.0
    %73 = vmatprep.subr.mxu0 0.0
    %74 = vmatpush2.msra.mxu0 0.0
    %75 = vmatprep.subr.mxu0 0.0
    %76 = vmatpush2.msra.mxu0 0.0
    %77 = vmatprep.subr.mxu0 0.0
    %78 = vmatpush2.msra.mxu0 0.0
    %79 = vmatprep.subr.mxu0 0.0
    %80 = vmatpush2.msra.mxu0 0.0
    %81 = vmatprep.subr.mxu0 0.0
    %82 = vmatpush2.msra.mxu0 0.0
    %83 = vmatprep.subr.mxu0 0.0
    %84 = vmatpush2.msra.mxu0 0.0
    %85 = vmatprep.subr.mxu0 0.0
    %86 = vmatpush2.msra.mxu0 0.0
    %87 = vmatprep.subr.mxu0 0.0
    %88 = vmatpush2.msra.mxu0 0.0
    %89 = vmatprep.subr.mxu0 0.0
    %90 = vmatpush2.msra.mxu0 0.0
    %91 = vmatprep.subr.mxu0 0.0
    %92 = vmatpush2.msra.mxu0 0.0
    %93 = vmatprep.subr.mxu0 0.0
    %94 = vmatpush2.msra.mxu0 0.0
    %95 = vmatprep.subr.mxu0 0.0
    %96 = vmatpush2.msra.mxu0 0.0
    %97 = vmatprep.subr.mxu0 0.0
    %98 = vmatpush2.msra.mxu0 0.0
    %99 = vmatprep.mubr.f32.mxu0 0.0
    %100 = vmatmul.mubr.f32.gmra.mxu0 %v30
    %v101 = vpop.f32.mrf.mxu0
    %v102 = vadd.f32 0.0, %v101
    %v103 = vpop.f32.mrf.mxu0
    %104 = vmatprep.mubr.f32.mxu0 0.0
    %105 = vmatmul.mubr.f32.gmra.mxu0 %v33
    %v106 = vpop.f32.mrf.mxu0
    %v107 = vadd.f32 0.0, %v106
    %v108 = vpop.f32.mrf.mxu0
    %109 = vdwg.mxu0
    %v110 = vlaneseq
    %v111 = vshrl.u32 %v110, 7
    %v112 = vadd.s32 %v111, 8
    %v113 = vlaneseq
    %v114 = vand.u32 %v113, 127
    %v115 = vshra.s32 %v111, 3
    %v116 = vshra.s32 %v112, 3
    %v117 = vshra.s32 %v114, 3
    %vm118 = vcmp.eq.s32.totalorder %v115, %v117
    %vm119 = vcmp.eq.s32.totalorder %v116, %v117
    %v120 = vsel %vm118, 0.0, -1e+30
    %v121 = vsel %vm119, 0.0, -1e+30
    %124 = vrot.lane.b32.xlu0 %v102, 96
    %v125 = vpop.permute.xlu0 %124
    %126 = vrot.lane.b32.xlu0 %v107, 96
    %v127 = vpop.permute.xlu0 %126
    %vm128 = vcmask 64512
    %v129 = vsel %vm128, %v102, 0
    %v131 = vsel %vm128, %v107, 0
    %v133 = vsel %vm128, %v125, 0
    %v135 = vsel %vm128, %v127, 0
    %137 = vmatprep.subr.mxu0 0.0
    %138 = vmatpush1.xpose.msra.mxu0 0.0
    %139 = vmatprep.subr.mxu0 0.0
    %140 = vmatpush1.xpose.msra.mxu0 0.0
    %141 = vmatprep.subr.mxu0 0.0
    %142 = vmatpush1.xpose.msra.mxu0 0.0
    %143 = vmatprep.subr.mxu0 0.0
    %144 = vmatpush1.xpose.msra.mxu0 0.0
    %145 = vmatprep.subr.mxu0 0.0
    %146 = vmatpush1.xpose.msra.mxu0 0.0
    %147 = vmatprep.subr.mxu0 0.0
    %148 = vmatpush1.xpose.msra.mxu0 0.0
    %149 = vmatprep.subr.mxu0 0.0
    %150 = vmatpush1.xpose.msra.mxu0 0.0
    %151 = vmatprep.subr.mxu0 0.0
    %152 = vmatpush1.xpose.msra.mxu0 0.0
    %153 = vmatprep.subr.mxu0 0.0
    %154 = vmatpush1.xpose.msra.mxu0 0.0
    %155 = vmatprep.subr.mxu0 0.0
    %156 = vmatpush1.xpose.msra.mxu0 0.0
    %157 = vmatprep.subr.mxu0 0.0
    %158 = vmatpush1.xpose.msra.mxu0 0.0
    %159 = vmatprep.subr.mxu0 0.0
    %160 = vmatpush1.xpose.msra.mxu0 0.0
    %161 = vmatprep.subr.mxu0 0.0
    %162 = vmatpush1.xpose.msra.mxu0 0.0
    %163 = vmatprep.subr.mxu0 0.0
    %164 = vmatpush1.xpose.msra.mxu0 0.0
    %165 = vmatprep.subr.mxu0 0.0
    %166 = vmatpush1.xpose.msra.mxu0 %v135
    %167 = vmatprep.subr.mxu0 0.0
    %168 = vmatpush1.xpose.msra.mxu0 %v133
    %169 = vmatprep.subr.mxu0 0.0
    %170 = vmatpush2.xpose.msra.mxu0 0.0
    %171 = vmatprep.subr.mxu0 0.0
    %172 = vmatpush2.xpose.msra.mxu0 0.0
    %173 = vmatprep.subr.mxu0 0.0
    %174 = vmatpush2.xpose.msra.mxu0 0.0
    %175 = vmatprep.subr.mxu0 0.0
    %176 = vmatpush2.xpose.msra.mxu0 0.0
    %177 = vmatprep.subr.mxu0 0.0
    %178 = vmatpush2.xpose.msra.mxu0 0.0
    %179 = vmatprep.subr.mxu0 0.0
    %180 = vmatpush2.xpose.msra.mxu0 0.0
    %181 = vmatprep.subr.mxu0 0.0
    %182 = vmatpush2.xpose.msra.mxu0 0.0
    %183 = vmatprep.subr.mxu0 0.0
    %184 = vmatpush2.xpose.msra.mxu0 0.0
    %185 = vmatprep.subr.mxu0 0.0
    %186 = vmatpush2.xpose.msra.mxu0 0.0
    %187 = vmatprep.subr.mxu0 0.0
    %188 = vmatpush2.xpose.msra.mxu0 0.0
    %189 = vmatprep.subr.mxu0 0.0
    %190 = vmatpush2.xpose.msra.mxu0 0.0
    %191 = vmatprep.subr.mxu0 0.0
    %192 = vmatpush2.xpose.msra.mxu0 0.0
    %193 = vmatprep.subr.mxu0 0.0
    %194 = vmatpush2.xpose.msra.mxu0 0.0
    %195 = vmatprep.subr.mxu0 0.0
    %196 = vmatpush2.xpose.msra.mxu0 0.0
    %197 = vmatprep.subr.mxu0 0.0
    %198 = vmatpush2.xpose.msra.mxu0 0.0
    %199 = vmatprep.subr.mxu0 0.0
    %200 = vmatpush2.xpose.msra.mxu0 0.0
    %201 = vmatprep.mubr.f32.mxu0 0.0
    %202 = vmatmul.mubr.f32.gmra.mxu0 %v129
    %v203 = vpop.f32.mrf.mxu0
    %v204 = vadd.f32 0.0, %v203
    %v205 = vpop.f32.mrf.mxu0
    %206 = vmatprep.mubr.f32.mxu0 0.0
    %207 = vmatmul.mubr.f32.gmra.mxu0 %v131
    %v208 = vpop.f32.mrf.mxu0
    %v209 = vadd.f32 0.0, %v208
    %v210 = vpop.f32.mrf.mxu0
    %211 = vdwg.mxu0
    %v212 = vmul.f32 %v204, 0.35355338
    %v213 = vmul.f32 %v209, 0.35355338
    %v214 = vadd.f32 %v212, %v120
    %v215 = vadd.f32 %v213, %v121
    %vm216 = vcmask 130048
    %v217 = vsel %vm216, %v214, -inf
    %218 = vmax.xlane.f32.xlu0 %v217
    %v219 = vpop.xlane.xlu0 %218
    %v220 = vsel %vm216, %v215, -inf
    %221 = vmax.xlane.f32.xlu0 %v220
    %v222 = vpop.xlane.xlu0 %221
    %v223 = vsub.f32 %v214, %v219
    %v224 = vsub.f32 %v215, %v222
    %v225 = vmul.f32 %v223, 1.442695
    %v226 = vpow.pop %v225
    %v227 = vmul.f32 %v224, 1.442695
    %v228 = vpow.pop %v227
    %v229 = vsel %vm216, %v226, 0.0
    %230 = vadd.xlane.f32.xlu0 %v229
    %v231 = vpop.xlane.xlu0 %230
    %v232 = vsel %vm216, %v228, 0.0
    %233 = vadd.xlane.f32.xlu0 %v232
    %v234 = vpop.xlane.xlu0 %233
    %v235 = vrcp.pop %v231
    %v236 = vrcp.pop %v234
    %v237 = vmul.f32 %v226, %v235
    %v238 = vmul.f32 %v228, %v236
    %239 = vrot.lane.b32.xlu0 %v102, 64
    %v240 = vpop.permute.xlu0 %239
    %241 = vrot.lane.b32.xlu0 %v107, 64
    %v242 = vpop.permute.xlu0 %241
    %v246 = vsel %vm216, %v237, 0
    %v249 = vsel %vm216, %v238, 0
    %251 = vmatprep.subr.mxu0 0.0
    %252 = vmatpush1.msra.mxu0 0.0
    %253 = vmatprep.subr.mxu0 0.0
    %254 = vmatpush1.msra.mxu0 0.0
    %255 = vmatprep.subr.mxu0 0.0
    %256 = vmatpush1.msra.mxu0 0.0
    %257 = vmatprep.subr.mxu0 0.0
    %258 = vmatpush1.msra.mxu0 0.0
    %259 = vmatprep.subr.mxu0 0.0
    %260 = vmatpush1.msra.mxu0 0.0
    %261 = vmatprep.subr.mxu0 0.0
    %262 = vmatpush1.msra.mxu0 0.0
    %263 = vmatprep.subr.mxu0 0.0
    %264 = vmatpush1.msra.mxu0 0.0
    %265 = vmatprep.subr.mxu0 0.0
    %266 = vmatpush1.msra.mxu0 0.0
    %267 = vmatprep.subr.mxu0 0.0
    %268 = vmatpush1.msra.mxu0 0.0
    %269 = vmatprep.subr.mxu0 0.0
    %270 = vmatpush1.msra.mxu0 0.0
    %271 = vmatprep.subr.mxu0 0.0
    %272 = vmatpush1.msra.mxu0 0.0
    %273 = vmatprep.subr.mxu0 0.0
    %274 = vmatpush1.msra.mxu0 0.0
    %275 = vmatprep.subr.mxu0 0.0
    %276 = vmatpush1.msra.mxu0 0.0
    %277 = vmatprep.subr.mxu0 0.0
    %278 = vmatpush1.msra.mxu0 0.0
    %279 = vmatprep.subr.mxu0 0.0
    %280 = vmatpush1.msra.mxu0 %v242
    %281 = vmatprep.subr.mxu0 0.0
    %282 = vmatpush1.msra.mxu0 %v240
    %283 = vmatprep.subr.mxu0 0.0
    %284 = vmatpush2.msra.mxu0 0.0
    %285 = vmatprep.subr.mxu0 0.0
    %286 = vmatpush2.msra.mxu0 0.0
    %287 = vmatprep.subr.mxu0 0.0
    %288 = vmatpush2.msra.mxu0 0.0
    %289 = vmatprep.subr.mxu0 0.0
    %290 = vmatpush2.msra.mxu0 0.0
    %291 = vmatprep.subr.mxu0 0.0
    %292 = vmatpush2.msra.mxu0 0.0
    %293 = vmatprep.subr.mxu0 0.0
    %294 = vmatpush2.msra.mxu0 0.0
    %295 = vmatprep.subr.mxu0 0.0
    %296 = vmatpush2.msra.mxu0 0.0
    %297 = vmatprep.subr.mxu0 0.0
    %298 = vmatpush2.msra.mxu0 0.0
    %299 = vmatprep.subr.mxu0 0.0
    %300 = vmatpush2.msra.mxu0 0.0
    %301 = vmatprep.subr.mxu0 0.0
    %302 = vmatpush2.msra.mxu0 0.0
    %303 = vmatprep.subr.mxu0 0.0
    %304 = vmatpush2.msra.mxu0 0.0
    %305 = vmatprep.subr.mxu0 0.0
    %306 = vmatpush2.msra.mxu0 0.0
    %307 = vmatprep.subr.mxu0 0.0
    %308 = vmatpush2.msra.mxu0 0.0
    %309 = vmatprep.subr.mxu0 0.0
    %310 = vmatpush2.msra.mxu0 0.0
    %311 = vmatprep.subr.mxu0 0.0
    %312 = vmatpush2.msra.mxu0 0.0
    %313 = vmatprep.subr.mxu0 0.0
    %314 = vmatpush2.msra.mxu0 0.0
    %315 = vmatprep.mubr.f32.mxu0 0.0
    %316 = vmatmul.mubr.f32.gmra.mxu0 %v246
    %v317 = vpop.f32.mrf.mxu0
    %v318 = vadd.f32 0.0, %v317
    %v319 = vpop.f32.mrf.mxu0
    %320 = vmatprep.mubr.f32.mxu0 0.0
    %321 = vmatmul.mubr.f32.gmra.mxu0 %v249
    %v322 = vpop.f32.mrf.mxu0
    %v323 = vadd.f32 0.0, %v322
    %v324 = vpop.f32.mrf.mxu0
    %325 = vdwg.mxu0
    %326 = vrot.lane.b32.xlu0 %v102, 120
    %v327 = vpop.permute.xlu0 %326
    %328 = vrot.lane.b32.xlu0 %v107, 120
    %v329 = vpop.permute.xlu0 %328
    %330 = vrot.lane.b32.xlu0 %v102, 88
    %v331 = vpop.permute.xlu0 %330
    %332 = vrot.lane.b32.xlu0 %v107, 88
    %v333 = vpop.permute.xlu0 %332
    %v334 = vsel %vm128, %v327, 0
    %v336 = vsel %vm128, %v329, 0
    %v338 = vsel %vm128, %v331, 0
    %v340 = vsel %vm128, %v333, 0
    %342 = vmatprep.subr.mxu0 0.0
    %343 = vmatpush1.xpose.msra.mxu0 0.0
    %344 = vmatprep.subr.mxu0 0.0
    %345 = vmatpush1.xpose.msra.mxu0 0.0
    %346 = vmatprep.subr.mxu0 0.0
    %347 = vmatpush1.xpose.msra.mxu0 0.0
    %348 = vmatprep.subr.mxu0 0.0
    %349 = vmatpush1.xpose.msra.mxu0 0.0
    %350 = vmatprep.subr.mxu0 0.0
    %351 = vmatpush1.xpose.msra.mxu0 0.0
    %352 = vmatprep.subr.mxu0 0.0
    %353 = vmatpush1.xpose.msra.mxu0 0.0
    %354 = vmatprep.subr.mxu0 0.0
    %355 = vmatpush1.xpose.msra.mxu0 0.0
    %356 = vmatprep.subr.mxu0 0.0
    %357 = vmatpush1.xpose.msra.mxu0 0.0
    %358 = vmatprep.subr.mxu0 0.0
    %359 = vmatpush1.xpose.msra.mxu0 0.0
    %360 = vmatprep.subr.mxu0 0.0
    %361 = vmatpush1.xpose.msra.mxu0 0.0
    %362 = vmatprep.subr.mxu0 0.0
    %363 = vmatpush1.xpose.msra.mxu0 0.0
    %364 = vmatprep.subr.mxu0 0.0
    %365 = vmatpush1.xpose.msra.mxu0 0.0
    %366 = vmatprep.subr.mxu0 0.0
    %367 = vmatpush1.xpose.msra.mxu0 0.0
    %368 = vmatprep.subr.mxu0 0.0
    %369 = vmatpush1.xpose.msra.mxu0 0.0
    %370 = vmatprep.subr.mxu0 0.0
    %371 = vmatpush1.xpose.msra.mxu0 %v340
    %372 = vmatprep.subr.mxu0 0.0
    %373 = vmatpush1.xpose.msra.mxu0 %v338
    %374 = vmatprep.subr.mxu0 0.0
    %375 = vmatpush2.xpose.msra.mxu0 0.0
    %376 = vmatprep.subr.mxu0 0.0
    %377 = vmatpush2.xpose.msra.mxu0 0.0
    %378 = vmatprep.subr.mxu0 0.0
    %379 = vmatpush2.xpose.msra.mxu0 0.0
    %380 = vmatprep.subr.mxu0 0.0
    %381 = vmatpush2.xpose.msra.mxu0 0.0
    %382 = vmatprep.subr.mxu0 0.0
    %383 = vmatpush2.xpose.msra.mxu0 0.0
    %384 = vmatprep.subr.mxu0 0.0
    %385 = vmatpush2.xpose.msra.mxu0 0.0
    %386 = vmatprep.subr.mxu0 0.0
    %387 = vmatpush2.xpose.msra.mxu0 0.0
    %388 = vmatprep.subr.mxu0 0.0
    %389 = vmatpush2.xpose.msra.mxu0 0.0
    %390 = vmatprep.subr.mxu0 0.0
    %391 = vmatpush2.xpose.msra.mxu0 0.0
    %392 = vmatprep.subr.mxu0 0.0
    %393 = vmatpush2.xpose.msra.mxu0 0.0
    %394 = vmatprep.subr.mxu0 0.0
    %395 = vmatpush2.xpose.msra.mxu0 0.0
    %396 = vmatprep.subr.mxu0 0.0
    %397 = vmatpush2.xpose.msra.mxu0 0.0
    %398 = vmatprep.subr.mxu0 0.0
    %399 = vmatpush2.xpose.msra.mxu0 0.0
    %400 = vmatprep.subr.mxu0 0.0
    %401 = vmatpush2.xpose.msra.mxu0 0.0
    %402 = vmatprep.subr.mxu0 0.0
    %403 = vmatpush2.xpose.msra.mxu0 0.0
    %404 = vmatprep.subr.mxu0 0.0
    %405 = vmatpush2.xpose.msra.mxu0 0.0
    %406 = vmatprep.mubr.f32.mxu0 0.0
    %407 = vmatmul.mubr.f32.gmra.mxu0 %v334
    %v408 = vpop.f32.mrf.mxu0
    %v409 = vadd.f32 0.0, %v408
    %v410 = vpop.f32.mrf.mxu0
    %411 = vmatprep.mubr.f32.mxu0 0.0
    %412 = vmatmul.mubr.f32.gmra.mxu0 %v336
    %v413 = vpop.f32.mrf.mxu0
    %v414 = vadd.f32 0.0, %v413
    %v415 = vpop.f32.mrf.mxu0
    %416 = vdwg.mxu0
    %v417 = vmul.f32 %v409, 0.35355338
    %v418 = vmul.f32 %v414, 0.35355338
    %v419 = vadd.f32 %v417, %v120
    %v420 = vadd.f32 %v418, %v121
    %v421 = vsel %vm216, %v419, -inf
    %422 = vmax.xlane.f32.xlu0 %v421
    %v423 = vpop.xlane.xlu0 %422
    %v424 = vsel %vm216, %v420, -inf
    %425 = vmax.xlane.f32.xlu0 %v424
    %v426 = vpop.xlane.xlu0 %425
    %v427 = vsub.f32 %v419, %v423
    %v428 = vsub.f32 %v420, %v426
    %v429 = vmul.f32 %v427, 1.442695
    %v430 = vpow.pop %v429
    %v431 = vmul.f32 %v428, 1.442695
    %v432 = vpow.pop %v431
    %v433 = vsel %vm216, %v430, 0.0
    %434 = vadd.xlane.f32.xlu0 %v433
    %v435 = vpop.xlane.xlu0 %434
    %v436 = vsel %vm216, %v432, 0.0
    %437 = vadd.xlane.f32.xlu0 %v436
    %v438 = vpop.xlane.xlu0 %437
    %v439 = vrcp.pop %v435
    %v440 = vrcp.pop %v438
    %v441 = vmul.f32 %v430, %v439
    %v442 = vmul.f32 %v432, %v440
    %443 = vrot.lane.b32.xlu0 %v102, 56
    %v444 = vpop.permute.xlu0 %443
    %445 = vrot.lane.b32.xlu0 %v107, 56
    %v446 = vpop.permute.xlu0 %445
    %v450 = vsel %vm216, %v441, 0
    %v453 = vsel %vm216, %v442, 0
    %455 = vmatprep.subr.mxu0 0.0
    %456 = vmatpush1.msra.mxu0 0.0
    %457 = vmatprep.subr.mxu0 0.0
    %458 = vmatpush1.msra.mxu0 0.0
    %459 = vmatprep.subr.mxu0 0.0
    %460 = vmatpush1.msra.mxu0 0.0
    %461 = vmatprep.subr.mxu0 0.0
    %462 = vmatpush1.msra.mxu0 0.0
    %463 = vmatprep.subr.mxu0 0.0
    %464 = vmatpush1.msra.mxu0 0.0
    %465 = vmatprep.subr.mxu0 0.0
    %466 = vmatpush1.msra.mxu0 0.0
    %467 = vmatprep.subr.mxu0 0.0
    %468 = vmatpush1.msra.mxu0 0.0
    %469 = vmatprep.subr.mxu0 0.0
    %470 = vmatpush1.msra.mxu0 0.0
    %471 = vmatprep.subr.mxu0 0.0
    %472 = vmatpush1.msra.mxu0 0.0
    %473 = vmatprep.subr.mxu0 0.0
    %474 = vmatpush1.msra.mxu0 0.0
    %475 = vmatprep.subr.mxu0 0.0
    %476 = vmatpush1.msra.mxu0 0.0
    %477 = vmatprep.subr.mxu0 0.0
    %478 = vmatpush1.msra.mxu0 0.0
    %479 = vmatprep.subr.mxu0 0.0
    %480 = vmatpush1.msra.mxu0 0.0
    %481 = vmatprep.subr.mxu0 0.0
    %482 = vmatpush1.msra.mxu0 0.0
    %483 = vmatprep.subr.mxu0 0.0
    %484 = vmatpush1.msra.mxu0 %v446
    %485 = vmatprep.subr.mxu0 0.0
    %486 = vmatpush1.msra.mxu0 %v444
    %487 = vmatprep.subr.mxu0 0.0
    %488 = vmatpush2.msra.mxu0 0.0
    %489 = vmatprep.subr.mxu0 0.0
    %490 = vmatpush2.msra.mxu0 0.0
    %491 = vmatprep.subr.mxu0 0.0
    %492 = vmatpush2.msra.mxu0 0.0
    %493 = vmatprep.subr.mxu0 0.0
    %494 = vmatpush2.msra.mxu0 0.0
    %495 = vmatprep.subr.mxu0 0.0
    %496 = vmatpush2.msra.mxu0 0.0
    %497 = vmatprep.subr.mxu0 0.0
    %498 = vmatpush2.msra.mxu0 0.0
    %499 = vmatprep.subr.mxu0 0.0
    %500 = vmatpush2.msra.mxu0 0.0
    %501 = vmatprep.subr.mxu0 0.0
    %502 = vmatpush2.msra.mxu0 0.0
    %503 = vmatprep.subr.mxu0 0.0
    %504 = vmatpush2.msra.mxu0 0.0
    %505 = vmatprep.subr.mxu0 0.0
    %506 = vmatpush2.msra.mxu0 0.0
    %507 = vmatprep.subr.mxu0 0.0
    %508 = vmatpush2.msra.mxu0 0.0
    %509 = vmatprep.subr.mxu0 0.0
    %510 = vmatpush2.msra.mxu0 0.0
    %511 = vmatprep.subr.mxu0 0.0
    %512 = vmatpush2.msra.mxu0 0.0
    %513 = vmatprep.subr.mxu0 0.0
    %514 = vmatpush2.msra.mxu0 0.0
    %515 = vmatprep.subr.mxu0 0.0
    %516 = vmatpush2.msra.mxu0 0.0
    %517 = vmatprep.subr.mxu0 0.0
    %518 = vmatpush2.msra.mxu0 0.0
    %519 = vmatprep.mubr.f32.mxu0 0.0
    %520 = vmatmul.mubr.f32.gmra.mxu0 %v450
    %v521 = vpop.f32.mrf.mxu0
    %v522 = vadd.f32 0.0, %v521
    %v523 = vpop.f32.mrf.mxu0
    %524 = vmatprep.mubr.f32.mxu0 0.0
    %525 = vmatmul.mubr.f32.gmra.mxu0 %v453
    %v526 = vpop.f32.mrf.mxu0
    %v527 = vadd.f32 0.0, %v526
    %v528 = vpop.f32.mrf.mxu0
    %529 = vdwg.mxu0
    %530 = vrot.lane.b32.xlu0 %v102, 112
    %v531 = vpop.permute.xlu0 %530
    %532 = vrot.lane.b32.xlu0 %v107, 112
    %v533 = vpop.permute.xlu0 %532
    %534 = vrot.lane.b32.xlu0 %v102, 80
    %v535 = vpop.permute.xlu0 %534
    %536 = vrot.lane.b32.xlu0 %v107, 80
    %v537 = vpop.permute.xlu0 %536
    %v538 = vsel %vm128, %v531, 0
    %v540 = vsel %vm128, %v533, 0
    %v542 = vsel %vm128, %v535, 0
    %v544 = vsel %vm128, %v537, 0
    %546 = vmatprep.subr.mxu0 0.0
    %547 = vmatpush1.xpose.msra.mxu0 0.0
    %548 = vmatprep.subr.mxu0 0.0
    %549 = vmatpush1.xpose.msra.mxu0 0.0
    %550 = vmatprep.subr.mxu0 0.0
    %551 = vmatpush1.xpose.msra.mxu0 0.0
    %552 = vmatprep.subr.mxu0 0.0
    %553 = vmatpush1.xpose.msra.mxu0 0.0
    %554 = vmatprep.subr.mxu0 0.0
    %555 = vmatpush1.xpose.msra.mxu0 0.0
    %556 = vmatprep.subr.mxu0 0.0
    %557 = vmatpush1.xpose.msra.mxu0 0.0
    %558 = vmatprep.subr.mxu0 0.0
    %559 = vmatpush1.xpose.msra.mxu0 0.0
    %560 = vmatprep.subr.mxu0 0.0
    %561 = vmatpush1.xpose.msra.mxu0 0.0
    %562 = vmatprep.subr.mxu0 0.0
    %563 = vmatpush1.xpose.msra.mxu0 0.0
    %564 = vmatprep.subr.mxu0 0.0
    %565 = vmatpush1.xpose.msra.mxu0 0.0
    %566 = vmatprep.subr.mxu0 0.0
    %567 = vmatpush1.xpose.msra.mxu0 0.0
    %568 = vmatprep.subr.mxu0 0.0
    %569 = vmatpush1.xpose.msra.mxu0 0.0
    %570 = vmatprep.subr.mxu0 0.0
    %571 = vmatpush1.xpose.msra.mxu0 0.0
    %572 = vmatprep.subr.mxu0 0.0
    %573 = vmatpush1.xpose.msra.mxu0 0.0
    %574 = vmatprep.subr.mxu0 0.0
    %575 = vmatpush1.xpose.msra.mxu0 %v544
    %576 = vmatprep.subr.mxu0 0.0
    %577 = vmatpush1.xpose.msra.mxu0 %v542
    %578 = vmatprep.subr.mxu0 0.0
    %579 = vmatpush2.xpose.msra.mxu0 0.0
    %580 = vmatprep.subr.mxu0 0.0
    %581 = vmatpush2.xpose.msra.mxu0 0.0
    %582 = vmatprep.subr.mxu0 0.0
    %583 = vmatpush2.xpose.msra.mxu0 0.0
    %584 = vmatprep.subr.mxu0 0.0
    %585 = vmatpush2.xpose.msra.mxu0 0.0
    %586 = vmatprep.subr.mxu0 0.0
    %587 = vmatpush2.xpose.msra.mxu0 0.0
    %588 = vmatprep.subr.mxu0 0.0
    %589 = vmatpush2.xpose.msra.mxu0 0.0
    %590 = vmatprep.subr.mxu0 0.0
    %591 = vmatpush2.xpose.msra.mxu0 0.0
    %592 = vmatprep.subr.mxu0 0.0
    %593 = vmatpush2.xpose.msra.mxu0 0.0
    %594 = vmatprep.subr.mxu0 0.0
    %595 = vmatpush2.xpose.msra.mxu0 0.0
    %596 = vmatprep.subr.mxu0 0.0
    %597 = vmatpush2.xpose.msra.mxu0 0.0
    %598 = vmatprep.subr.mxu0 0.0
    %599 = vmatpush2.xpose.msra.mxu0 0.0
    %600 = vmatprep.subr.mxu0 0.0
    %601 = vmatpush2.xpose.msra.mxu0 0.0
    %602 = vmatprep.subr.mxu0 0.0
    %603 = vmatpush2.xpose.msra.mxu0 0.0
    %604 = vmatprep.subr.mxu0 0.0
    %605 = vmatpush2.xpose.msra.mxu0 0.0
    %606 = vmatprep.subr.mxu0 0.0
    %607 = vmatpush2.xpose.msra.mxu0 0.0
    %608 = vmatprep.subr.mxu0 0.0
    %609 = vmatpush2.xpose.msra.mxu0 0.0
    %610 = vmatprep.mubr.f32.mxu0 0.0
    %611 = vmatmul.mubr.f32.gmra.mxu0 %v538
    %v612 = vpop.f32.mrf.mxu0
    %v613 = vadd.f32 0.0, %v612
    %v614 = vpop.f32.mrf.mxu0
    %615 = vmatprep.mubr.f32.mxu0 0.0
    %616 = vmatmul.mubr.f32.gmra.mxu0 %v540
    %v617 = vpop.f32.mrf.mxu0
    %v618 = vadd.f32 0.0, %v617
    %v619 = vpop.f32.mrf.mxu0
    %620 = vdwg.mxu0
    %v621 = vmul.f32 %v613, 0.35355338
    %v622 = vmul.f32 %v618, 0.35355338
    %v623 = vadd.f32 %v621, %v120
    %v624 = vadd.f32 %v622, %v121
    %v625 = vsel %vm216, %v623, -inf
    %626 = vmax.xlane.f32.xlu0 %v625
    %v627 = vpop.xlane.xlu0 %626
    %v628 = vsel %vm216, %v624, -inf
    %629 = vmax.xlane.f32.xlu0 %v628
    %v630 = vpop.xlane.xlu0 %629
    %v631 = vsub.f32 %v623, %v627
    %v632 = vsub.f32 %v624, %v630
    %v633 = vmul.f32 %v631, 1.442695
    %v634 = vpow.pop %v633
    %v635 = vmul.f32 %v632, 1.442695
    %v636 = vpow.pop %v635
    %v637 = vsel %vm216, %v634, 0.0
    %638 = vadd.xlane.f32.xlu0 %v637
    %v639 = vpop.xlane.xlu0 %638
    %v640 = vsel %vm216, %v636, 0.0
    %641 = vadd.xlane.f32.xlu0 %v640
    %v642 = vpop.xlane.xlu0 %641
    %v643 = vrcp.pop %v639
    %v644 = vrcp.pop %v642
    %v645 = vmul.f32 %v634, %v643
    %v646 = vmul.f32 %v636, %v644
    %647 = vrot.lane.b32.xlu0 %v102, 48
    %v648 = vpop.permute.xlu0 %647
    %649 = vrot.lane.b32.xlu0 %v107, 48
    %v650 = vpop.permute.xlu0 %649
    %v654 = vsel %vm216, %v645, 0
    %v657 = vsel %vm216, %v646, 0
    %659 = vmatprep.subr.mxu0 0.0
    %660 = vmatpush1.msra.mxu0 0.0
    %661 = vmatprep.subr.mxu0 0.0
    %662 = vmatpush1.msra.mxu0 0.0
    %663 = vmatprep.subr.mxu0 0.0
    %664 = vmatpush1.msra.mxu0 0.0
    %665 = vmatprep.subr.mxu0 0.0
    %666 = vmatpush1.msra.mxu0 0.0
    %667 = vmatprep.subr.mxu0 0.0
    %668 = vmatpush1.msra.mxu0 0.0
    %669 = vmatprep.subr.mxu0 0.0
    %670 = vmatpush1.msra.mxu0 0.0
    %671 = vmatprep.subr.mxu0 0.0
    %672 = vmatpush1.msra.mxu0 0.0
    %673 = vmatprep.subr.mxu0 0.0
    %674 = vmatpush1.msra.mxu0 0.0
    %675 = vmatprep.subr.mxu0 0.0
    %676 = vmatpush1.msra.mxu0 0.0
    %677 = vmatprep.subr.mxu0 0.0
    %678 = vmatpush1.msra.mxu0 0.0
    %679 = vmatprep.subr.mxu0 0.0
    %680 = vmatpush1.msra.mxu0 0.0
    %681 = vmatprep.subr.mxu0 0.0
    %682 = vmatpush1.msra.mxu0 0.0
    %683 = vmatprep.subr.mxu0 0.0
    %684 = vmatpush1.msra.mxu0 0.0
    %685 = vmatprep.subr.mxu0 0.0
    %686 = vmatpush1.msra.mxu0 0.0
    %687 = vmatprep.subr.mxu0 0.0
    %688 = vmatpush1.msra.mxu0 %v650
    %689 = vmatprep.subr.mxu0 0.0
    %690 = vmatpush1.msra.mxu0 %v648
    %691 = vmatprep.subr.mxu0 0.0
    %692 = vmatpush2.msra.mxu0 0.0
    %693 = vmatprep.subr.mxu0 0.0
    %694 = vmatpush2.msra.mxu0 0.0
    %695 = vmatprep.subr.mxu0 0.0
    %696 = vmatpush2.msra.mxu0 0.0
    %697 = vmatprep.subr.mxu0 0.0
    %698 = vmatpush2.msra.mxu0 0.0
    %699 = vmatprep.subr.mxu0 0.0
    %700 = vmatpush2.msra.mxu0 0.0
    %701 = vmatprep.subr.mxu0 0.0
    %702 = vmatpush2.msra.mxu0 0.0
    %703 = vmatprep.subr.mxu0 0.0
    %704 = vmatpush2.msra.mxu0 0.0
    %705 = vmatprep.subr.mxu0 0.0
    %706 = vmatpush2.msra.mxu0 0.0
    %707 = vmatprep.subr.mxu0 0.0
    %708 = vmatpush2.msra.mxu0 0.0
    %709 = vmatprep.subr.mxu0 0.0
    %710 = vmatpush2.msra.mxu0 0.0
    %711 = vmatprep.subr.mxu0 0.0
    %712 = vmatpush2.msra.mxu0 0.0
    %713 = vmatprep.subr.mxu0 0.0
    %714 = vmatpush2.msra.mxu0 0.0
    %715 = vmatprep.subr.mxu0 0.0
    %716 = vmatpush2.msra.mxu0 0.0
    %717 = vmatprep.subr.mxu0 0.0
    %718 = vmatpush2.msra.mxu0 0.0
    %719 = vmatprep.subr.mxu0 0.0
    %720 = vmatpush2.msra.mxu0 0.0
    %721 = vmatprep.subr.mxu0 0.0
    %722 = vmatpush2.msra.mxu0 0.0
    %723 = vmatprep.mubr.f32.mxu0 0.0
    %724 = vmatmul.mubr.f32.gmra.mxu0 %v654
    %v725 = vpop.f32.mrf.mxu0
    %v726 = vadd.f32 0.0, %v725
    %v727 = vpop.f32.mrf.mxu0
    %728 = vmatprep.mubr.f32.mxu0 0.0
    %729 = vmatmul.mubr.f32.gmra.mxu0 %v657
    %v730 = vpop.f32.mrf.mxu0
    %v731 = vadd.f32 0.0, %v730
    %v732 = vpop.f32.mrf.mxu0
    %733 = vdwg.mxu0
    %734 = vrot.lane.b32.xlu0 %v102, 104
    %v735 = vpop.permute.xlu0 %734
    %736 = vrot.lane.b32.xlu0 %v107, 104
    %v737 = vpop.permute.xlu0 %736
    %738 = vrot.lane.b32.xlu0 %v102, 72
    %v739 = vpop.permute.xlu0 %738
    %740 = vrot.lane.b32.xlu0 %v107, 72
    %v741 = vpop.permute.xlu0 %740
    %v742 = vsel %vm128, %v735, 0
    %v744 = vsel %vm128, %v737, 0
    %v746 = vsel %vm128, %v739, 0
    %v748 = vsel %vm128, %v741, 0
    %750 = vmatprep.subr.mxu0 0.0
    %751 = vmatpush1.xpose.msra.mxu0 0.0
    %752 = vmatprep.subr.mxu0 0.0
    %753 = vmatpush1.xpose.msra.mxu0 0.0
    %754 = vmatprep.subr.mxu0 0.0
    %755 = vmatpush1.xpose.msra.mxu0 0.0
    %756 = vmatprep.subr.mxu0 0.0
    %757 = vmatpush1.xpose.msra.mxu0 0.0
    %758 = vmatprep.subr.mxu0 0.0
    %759 = vmatpush1.xpose.msra.mxu0 0.0
    %760 = vmatprep.subr.mxu0 0.0
    %761 = vmatpush1.xpose.msra.mxu0 0.0
    %762 = vmatprep.subr.mxu0 0.0
    %763 = vmatpush1.xpose.msra.mxu0 0.0
    %764 = vmatprep.subr.mxu0 0.0
    %765 = vmatpush1.xpose.msra.mxu0 0.0
    %766 = vmatprep.subr.mxu0 0.0
    %767 = vmatpush1.xpose.msra.mxu0 0.0
    %768 = vmatprep.subr.mxu0 0.0
    %769 = vmatpush1.xpose.msra.mxu0 0.0
    %770 = vmatprep.subr.mxu0 0.0
    %771 = vmatpush1.xpose.msra.mxu0 0.0
    %772 = vmatprep.subr.mxu0 0.0
    %773 = vmatpush1.xpose.msra.mxu0 0.0
    %774 = vmatprep.subr.mxu0 0.0
    %775 = vmatpush1.xpose.msra.mxu0 0.0
    %776 = vmatprep.subr.mxu0 0.0
    %777 = vmatpush1.xpose.msra.mxu0 0.0
    %778 = vmatprep.subr.mxu0 0.0
    %779 = vmatpush1.xpose.msra.mxu0 %v748
    %780 = vmatprep.subr.mxu0 0.0
    %781 = vmatpush1.xpose.msra.mxu0 %v746
    %782 = vmatprep.subr.mxu0 0.0
    %783 = vmatpush2.xpose.msra.mxu0 0.0
    %784 = vmatprep.subr.mxu0 0.0
    %785 = vmatpush2.xpose.msra.mxu0 0.0
    %786 = vmatprep.subr.mxu0 0.0
    %787 = vmatpush2.xpose.msra.mxu0 0.0
    %788 = vmatprep.subr.mxu0 0.0
    %789 = vmatpush2.xpose.msra.mxu0 0.0
    %790 = vmatprep.subr.mxu0 0.0
    %791 = vmatpush2.xpose.msra.mxu0 0.0
    %792 = vmatprep.subr.mxu0 0.0
    %793 = vmatpush2.xpose.msra.mxu0 0.0
    %794 = vmatprep.subr.mxu0 0.0
    %795 = vmatpush2.xpose.msra.mxu0 0.0
    %796 = vmatprep.subr.mxu0 0.0
    %797 = vmatpush2.xpose.msra.mxu0 0.0
    %798 = vmatprep.subr.mxu0 0.0
    %799 = vmatpush2.xpose.msra.mxu0 0.0
    %800 = vmatprep.subr.mxu0 0.0
    %801 = vmatpush2.xpose.msra.mxu0 0.0
    %802 = vmatprep.subr.mxu0 0.0
    %803 = vmatpush2.xpose.msra.mxu0 0.0
    %804 = vmatprep.subr.mxu0 0.0
    %805 = vmatpush2.xpose.msra.mxu0 0.0
    %806 = vmatprep.subr.mxu0 0.0
    %807 = vmatpush2.xpose.msra.mxu0 0.0
    %808 = vmatprep.subr.mxu0 0.0
    %809 = vmatpush2.xpose.msra.mxu0 0.0
    %810 = vmatprep.subr.mxu0 0.0
    %811 = vmatpush2.xpose.msra.mxu0 0.0
    %812 = vmatprep.subr.mxu0 0.0
    %813 = vmatpush2.xpose.msra.mxu0 0.0
    %814 = vmatprep.mubr.f32.mxu0 0.0
    %815 = vmatmul.mubr.f32.gmra.mxu0 %v742
    %v816 = vpop.f32.mrf.mxu0
    %v817 = vadd.f32 0.0, %v816
    %v818 = vpop.f32.mrf.mxu0
    %819 = vmatprep.mubr.f32.mxu0 0.0
    %820 = vmatmul.mubr.f32.gmra.mxu0 %v744
    %v821 = vpop.f32.mrf.mxu0
    %v822 = vadd.f32 0.0, %v821
    %v823 = vpop.f32.mrf.mxu0
    %824 = vdwg.mxu0
    %v825 = vmul.f32 %v817, 0.35355338
    %v826 = vmul.f32 %v822, 0.35355338
    %v827 = vadd.f32 %v825, %v120
    %v828 = vadd.f32 %v826, %v121
    %v829 = vsel %vm216, %v827, -inf
    %830 = vmax.xlane.f32.xlu0 %v829
    %v831 = vpop.xlane.xlu0 %830
    %v832 = vsel %vm216, %v828, -inf
    %833 = vmax.xlane.f32.xlu0 %v832
    %v834 = vpop.xlane.xlu0 %833
    %v835 = vsub.f32 %v827, %v831
    %v836 = vsub.f32 %v828, %v834
    %v837 = vmul.f32 %v835, 1.442695
    %v838 = vpow.pop %v837
    %v839 = vmul.f32 %v836, 1.442695
    %v840 = vpow.pop %v839
    %v841 = vsel %vm216, %v838, 0.0
    %842 = vadd.xlane.f32.xlu0 %v841
    %v843 = vpop.xlane.xlu0 %842
    %v844 = vsel %vm216, %v840, 0.0
    %845 = vadd.xlane.f32.xlu0 %v844
    %v846 = vpop.xlane.xlu0 %845
    %v847 = vrcp.pop %v843
    %v848 = vrcp.pop %v846
    %v849 = vmul.f32 %v838, %v847
    %v850 = vmul.f32 %v840, %v848
    %851 = vrot.lane.b32.xlu0 %v102, 40
    %v852 = vpop.permute.xlu0 %851
    %853 = vrot.lane.b32.xlu0 %v107, 40
    %v854 = vpop.permute.xlu0 %853
    %v858 = vsel %vm216, %v849, 0
    %v861 = vsel %vm216, %v850, 0
    %863 = vmatprep.subr.mxu0 0.0
    %864 = vmatpush1.msra.mxu0 0.0
    %865 = vmatprep.subr.mxu0 0.0
    %866 = vmatpush1.msra.mxu0 0.0
    %867 = vmatprep.subr.mxu0 0.0
    %868 = vmatpush1.msra.mxu0 0.0
    %869 = vmatprep.subr.mxu0 0.0
    %870 = vmatpush1.msra.mxu0 0.0
    %871 = vmatprep.subr.mxu0 0.0
    %872 = vmatpush1.msra.mxu0 0.0
    %873 = vmatprep.subr.mxu0 0.0
    %874 = vmatpush1.msra.mxu0 0.0
    %875 = vmatprep.subr.mxu0 0.0
    %876 = vmatpush1.msra.mxu0 0.0
    %877 = vmatprep.subr.mxu0 0.0
    %878 = vmatpush1.msra.mxu0 0.0
    %879 = vmatprep.subr.mxu0 0.0
    %880 = vmatpush1.msra.mxu0 0.0
    %881 = vmatprep.subr.mxu0 0.0
    %882 = vmatpush1.msra.mxu0 0.0
    %883 = vmatprep.subr.mxu0 0.0
    %884 = vmatpush1.msra.mxu0 0.0
    %885 = vmatprep.subr.mxu0 0.0
    %886 = vmatpush1.msra.mxu0 0.0
    %887 = vmatprep.subr.mxu0 0.0
    %888 = vmatpush1.msra.mxu0 0.0
    %889 = vmatprep.subr.mxu0 0.0
    %890 = vmatpush1.msra.mxu0 0.0
    %891 = vmatprep.subr.mxu0 0.0
    %892 = vmatpush1.msra.mxu0 %v854
    %893 = vmatprep.subr.mxu0 0.0
    %894 = vmatpush1.msra.mxu0 %v852
    %895 = vmatprep.subr.mxu0 0.0
    %896 = vmatpush2.msra.mxu0 0.0
    %897 = vmatprep.subr.mxu0 0.0
    %898 = vmatpush2.msra.mxu0 0.0
    %899 = vmatprep.subr.mxu0 0.0
    %900 = vmatpush2.msra.mxu0 0.0
    %901 = vmatprep.subr.mxu0 0.0
    %902 = vmatpush2.msra.mxu0 0.0
    %903 = vmatprep.subr.mxu0 0.0
    %904 = vmatpush2.msra.mxu0 0.0
    %905 = vmatprep.subr.mxu0 0.0
    %906 = vmatpush2.msra.mxu0 0.0
    %907 = vmatprep.subr.mxu0 0.0
    %908 = vmatpush2.msra.mxu0 0.0
    %909 = vmatprep.subr.mxu0 0.0
    %910 = vmatpush2.msra.mxu0 0.0
    %911 = vmatprep.subr.mxu0 0.0
    %912 = vmatpush2.msra.mxu0 0.0
    %913 = vmatprep.subr.mxu0 0.0
    %914 = vmatpush2.msra.mxu0 0.0
    %915 = vmatprep.subr.mxu0 0.0
    %916 = vmatpush2.msra.mxu0 0.0
    %917 = vmatprep.subr.mxu0 0.0
    %918 = vmatpush2.msra.mxu0 0.0
    %919 = vmatprep.subr.mxu0 0.0
    %920 = vmatpush2.msra.mxu0 0.0
    %921 = vmatprep.subr.mxu0 0.0
    %922 = vmatpush2.msra.mxu0 0.0
    %923 = vmatprep.subr.mxu0 0.0
    %924 = vmatpush2.msra.mxu0 0.0
    %925 = vmatprep.subr.mxu0 0.0
    %926 = vmatpush2.msra.mxu0 0.0
    %927 = vmatprep.mubr.f32.mxu0 0.0
    %928 = vmatmul.mubr.f32.gmra.mxu0 %v858
    %v929 = vpop.f32.mrf.mxu0
    %v930 = vadd.f32 0.0, %v929
    %v931 = vpop.f32.mrf.mxu0
    %932 = vmatprep.mubr.f32.mxu0 0.0
    %933 = vmatmul.mubr.f32.gmra.mxu0 %v861
    %v934 = vpop.f32.mrf.mxu0
    %v935 = vadd.f32 0.0, %v934
    %v936 = vpop.f32.mrf.mxu0
    %937 = vdwg.mxu0
    %940 = vrot.lane.b32.xlu0 %v522, 8
    %v941 = vpop.permute.xlu0 %940
    %942 = vrot.lane.b32.xlu0 %v527, 8
    %v943 = vpop.permute.xlu0 %942
    %948 = vrot.lane.b32.xlu0 %v726, 16
    %v949 = vpop.permute.xlu0 %948
    %950 = vrot.lane.b32.xlu0 %v731, 16
    %v951 = vpop.permute.xlu0 %950
    %956 = vrot.lane.b32.xlu0 %v930, 24
    %v957 = vpop.permute.xlu0 %956
    %958 = vrot.lane.b32.xlu0 %v935, 24
    %v959 = vpop.permute.xlu0 %958
    %v962 = vsel %vm128, %v318, %v941
    %v963 = vsel %vm128, %v323, %v943
    %v964 = vsel %vm216, %v962, %v949
    %v965 = vsel %vm216, %v963, %v951
    %vm966 = vcmask 195584
    %v967 = vsel %vm966, %v964, %v957
    %v968 = vsel %vm966, %v965, %v959
    %973 = vrot.lane.b32.xlu0 %v23, 32
    %v974 = vpop.permute.xlu0 %973
    %975 = vrot.lane.b32.xlu0 %v24, 32
    %v976 = vpop.permute.xlu0 %975
    %977 = vrot.lane.b32.xlu0 %v25, 32
    %v978 = vpop.permute.xlu0 %977
    %979 = vrot.lane.b32.xlu0 %v26, 32
    %v980 = vpop.permute.xlu0 %979
    %v986 = vsel %vm28, %v967, 0
    %v989 = vsel %vm28, %v968, 0
    %991 = vmatprep.subr.mxu0 0.0
    %992 = vmatpush1.msra.mxu0 0.0
    %993 = vmatprep.subr.mxu0 0.0
    %994 = vmatpush1.msra.mxu0 0.0
    %995 = vmatprep.subr.mxu0 0.0
    %996 = vmatpush1.msra.mxu0 0.0
    %997 = vmatprep.subr.mxu0 0.0
    %998 = vmatpush1.msra.mxu0 0.0
    %999 = vmatprep.subr.mxu0 0.0
    %1000 = vmatpush1.msra.mxu0 0.0
    %1001 = vmatprep.subr.mxu0 0.0
    %1002 = vmatpush1.msra.mxu0 0.0
    %1003 = vmatprep.subr.mxu0 0.0
    %1004 = vmatpush1.msra.mxu0 0.0
    %1005 = vmatprep.subr.mxu0 0.0
    %1006 = vmatpush1.msra.mxu0 0.0
    %1007 = vmatprep.subr.mxu0 0.0
    %1008 = vmatpush1.msra.mxu0 0.0
    %1009 = vmatprep.subr.mxu0 0.0
    %1010 = vmatpush1.msra.mxu0 0.0
    %1011 = vmatprep.subr.mxu0 0.0
    %1012 = vmatpush1.msra.mxu0 0.0
    %1013 = vmatprep.subr.mxu0 0.0
    %1014 = vmatpush1.msra.mxu0 0.0
    %1015 = vmatprep.subr.mxu0 0.0
    %1016 = vmatpush1.msra.mxu0 %v980
    %1017 = vmatprep.subr.mxu0 0.0
    %1018 = vmatpush1.msra.mxu0 %v978
    %1019 = vmatprep.subr.mxu0 0.0
    %1020 = vmatpush1.msra.mxu0 %v976
    %1021 = vmatprep.subr.mxu0 0.0
    %1022 = vmatpush1.msra.mxu0 %v974
    %1023 = vmatprep.subr.mxu0 0.0
    %1024 = vmatpush2.msra.mxu0 0.0
    %1025 = vmatprep.subr.mxu0 0.0
    %1026 = vmatpush2.msra.mxu0 0.0
    %1027 = vmatprep.subr.mxu0 0.0
    %1028 = vmatpush2.msra.mxu0 0.0
    %1029 = vmatprep.subr.mxu0 0.0
    %1030 = vmatpush2.msra.mxu0 0.0
    %1031 = vmatprep.subr.mxu0 0.0
    %1032 = vmatpush2.msra.mxu0 0.0
    %1033 = vmatprep.subr.mxu0 0.0
    %1034 = vmatpush2.msra.mxu0 0.0
    %1035 = vmatprep.subr.mxu0 0.0
    %1036 = vmatpush2.msra.mxu0 0.0
    %1037 = vmatprep.subr.mxu0 0.0
    %1038 = vmatpush2.msra.mxu0 0.0
    %1039 = vmatprep.subr.mxu0 0.0
    %1040 = vmatpush2.msra.mxu0 0.0
    %1041 = vmatprep.subr.mxu0 0.0
    %1042 = vmatpush2.msra.mxu0 0.0
    %1043 = vmatprep.subr.mxu0 0.0
    %1044 = vmatpush2.msra.mxu0 0.0
    %1045 = vmatprep.subr.mxu0 0.0
    %1046 = vmatpush2.msra.mxu0 0.0
    %1047 = vmatprep.subr.mxu0 0.0
    %1048 = vmatpush2.msra.mxu0 0.0
    %1049 = vmatprep.subr.mxu0 0.0
    %1050 = vmatpush2.msra.mxu0 0.0
    %1051 = vmatprep.subr.mxu0 0.0
    %1052 = vmatpush2.msra.mxu0 0.0
    %1053 = vmatprep.subr.mxu0 0.0
    %1054 = vmatpush2.msra.mxu0 0.0
    %1055 = vmatprep.mubr.f32.mxu0 0.0
    %1056 = vmatmul.mubr.f32.gmra.mxu0 %v986
    %v1057 = vpop.f32.mrf.mxu0
    %v1058 = vadd.f32 0.0, %v1057
    %v1059 = vpop.f32.mrf.mxu0
    %1060 = vmatprep.mubr.f32.mxu0 0.0
    %1061 = vmatmul.mubr.f32.gmra.mxu0 %v989
    %v1062 = vpop.f32.mrf.mxu0
    %v1063 = vadd.f32 0.0, %v1062
    %v1064 = vpop.f32.mrf.mxu0
    %1065 = vdwg.mxu0
    %v1066 = vadd.f32 %v21, %v1058
    %v1067 = vadd.f32 %v22, %v1063
    %v1068 = vsel %vm28, %v1066, 0.0
    %1069 = vadd.xlane.f32.xlu0 %v1068
    %v1070 = vpop.xlane.xlu0 %1069
    %v1071 = vsel %vm28, %v1067, 0.0
    %1072 = vadd.xlane.f32.xlu0 %v1071
    %v1073 = vpop.xlane.xlu0 %1072
    %v1074 = vrcp.pop 32.0
    %v1075 = vmul.f32 %v1070, %v1074
    %v1076 = vmul.f32 %v1073, %v1074
    %v1077 = vsub.f32 %v1066, %v1075
    %v1078 = vsub.f32 %v1067, %v1076
    %v1079 = vmul.f32 %v1077, %v1077
    %v1080 = vmul.f32 %v1078, %v1078
    %v1081 = vsel %vm28, %v1079, 0.0
    %1082 = vadd.xlane.f32.xlu0 %v1081
    %v1083 = vpop.xlane.xlu0 %1082
    %v1084 = vsel %vm28, %v1080, 0.0
    %1085 = vadd.xlane.f32.xlu0 %v1084
    %v1086 = vpop.xlane.xlu0 %1085
    %v1087 = vmul.f32 %v1083, %v1074
    %v1088 = vmul.f32 %v1086, %v1074
    %v1089 = vrsqrt.pop %v1087
    %v1090 = vmul.f32 %v1087, %v1089
    %vm1091 = vcmp.eq.f32.partialorder %v1087, inf
    %v1092 = vsel %vm1091, %v1087, %v1090
    %vm1093 = vcmp.eq.f32.partialorder %v1087, 0.0
    %v1094 = vand.u32 %v1087, 2147483648
    %v1095 = vsel %vm1093, %v1094, %v1092
    %v1096 = vrsqrt.pop %v1088
    %v1097 = vmul.f32 %v1088, %v1096
    %vm1098 = vcmp.eq.f32.partialorder %v1088, inf
    %v1099 = vsel %vm1098, %v1088, %v1097
    %vm1100 = vcmp.eq.f32.partialorder %v1088, 0.0
    %v1101 = vand.u32 %v1088, 2147483648
    %v1102 = vsel %vm1100, %v1101, %v1099
    %v1103 = vadd.f32 %v1095, 1e-06
    %v1104 = vadd.f32 %v1102, 1e-06
    %v1105 = vrcp.pop %v1103
    %v1106 = vmul.f32 %v1077, %v1105
    %v1107 = vrcp.pop %v1104
    %v1108 = vmul.f32 %v1078, %v1107
    %v1109 = vlaneseq
    %v1110 = vshrl.u32 %v1109, 7
    %v1111 = vsub.s32 2, %v1110
    %v1112 = vrot.slane %v27, %v1111
    %v1113 = vmul.f32 %v1106, %v1112
    %v1114 = vmul.f32 %v1108, %v1112
    %v1115 = vlaneseq
    %v1116 = vshrl.u32 %v1115, 7
    %v1117 = vsub.s32 3, %v1116
    %v1118 = vrot.slane %v27, %v1117
    %v1119 = vadd.f32 %v1113, %v1118
    %v1120 = vadd.f32 %v1114, %v1118
    %v1121 = vld [vmem:[%s2] sm:$0xff]
    %v1122 = vld [vmem:[%s2 + $0x8] sm:$0xff]
    %v1123 = vld [vmem:[%s2 + $0x10] sm:$0xff]
    %v1124 = vld [vmem:[%s2 + $0x18] sm:$0xff]
    %v1125 = vlaneseq
    %v1126 = vshrl.u32 %v1125, 7
    %v1127 = vsub.s32 0, %v1126
    %v1128 = vrot.slane %v27, %v1127
    %v1130 = vsel %vm28, %v1119, 0
    %v1133 = vsel %vm28, %v1120, 0
    %1135 = vmatprep.subr.mxu0 0.0
    %1136 = vmatpush1.msra.mxu0 0.0
    %1137 = vmatprep.subr.mxu0 0.0
    %1138 = vmatpush1.msra.mxu0 0.0
    %1139 = vmatprep.subr.mxu0 0.0
    %1140 = vmatpush1.msra.mxu0 0.0
    %1141 = vmatprep.subr.mxu0 0.0
    %1142 = vmatpush1.msra.mxu0 0.0
    %1143 = vmatprep.subr.mxu0 0.0
    %1144 = vmatpush1.msra.mxu0 0.0
    %1145 = vmatprep.subr.mxu0 0.0
    %1146 = vmatpush1.msra.mxu0 0.0
    %1147 = vmatprep.subr.mxu0 0.0
    %1148 = vmatpush1.msra.mxu0 0.0
    %1149 = vmatprep.subr.mxu0 0.0
    %1150 = vmatpush1.msra.mxu0 0.0
    %1151 = vmatprep.subr.mxu0 0.0
    %1152 = vmatpush1.msra.mxu0 0.0
    %1153 = vmatprep.subr.mxu0 0.0
    %1154 = vmatpush1.msra.mxu0 0.0
    %1155 = vmatprep.subr.mxu0 0.0
    %1156 = vmatpush1.msra.mxu0 0.0
    %1157 = vmatprep.subr.mxu0 0.0
    %1158 = vmatpush1.msra.mxu0 0.0
    %1159 = vmatprep.subr.mxu0 0.0
    %1160 = vmatpush1.msra.mxu0 %v1124
    %1161 = vmatprep.subr.mxu0 0.0
    %1162 = vmatpush1.msra.mxu0 %v1123
    %1163 = vmatprep.subr.mxu0 0.0
    %1164 = vmatpush1.msra.mxu0 %v1122
    %1165 = vmatprep.subr.mxu0 0.0
    %1166 = vmatpush1.msra.mxu0 %v1121
    %1167 = vmatprep.subr.mxu0 0.0
    %1168 = vmatpush2.msra.mxu0 0.0
    %1169 = vmatprep.subr.mxu0 0.0
    %1170 = vmatpush2.msra.mxu0 0.0
    %1171 = vmatprep.subr.mxu0 0.0
    %1172 = vmatpush2.msra.mxu0 0.0
    %1173 = vmatprep.subr.mxu0 0.0
    %1174 = vmatpush2.msra.mxu0 0.0
    %1175 = vmatprep.subr.mxu0 0.0
    %1176 = vmatpush2.msra.mxu0 0.0
    %1177 = vmatprep.subr.mxu0 0.0
    %1178 = vmatpush2.msra.mxu0 0.0
    %1179 = vmatprep.subr.mxu0 0.0
    %1180 = vmatpush2.msra.mxu0 0.0
    %1181 = vmatprep.subr.mxu0 0.0
    %1182 = vmatpush2.msra.mxu0 0.0
    %1183 = vmatprep.subr.mxu0 0.0
    %1184 = vmatpush2.msra.mxu0 0.0
    %1185 = vmatprep.subr.mxu0 0.0
    %1186 = vmatpush2.msra.mxu0 0.0
    %1187 = vmatprep.subr.mxu0 0.0
    %1188 = vmatpush2.msra.mxu0 0.0
    %1189 = vmatprep.subr.mxu0 0.0
    %1190 = vmatpush2.msra.mxu0 0.0
    %1191 = vmatprep.subr.mxu0 0.0
    %1192 = vmatpush2.msra.mxu0 0.0
    %1193 = vmatprep.subr.mxu0 0.0
    %1194 = vmatpush2.msra.mxu0 0.0
    %1195 = vmatprep.subr.mxu0 0.0
    %1196 = vmatpush2.msra.mxu0 0.0
    %1197 = vmatprep.subr.mxu0 0.0
    %1198 = vmatpush2.msra.mxu0 0.0
    %1199 = vmatprep.mubr.f32.mxu0 0.0
    %1200 = vmatmul.mubr.f32.gmra.mxu0 %v1130
    %v1201 = vpop.f32.mrf.mxu0
    %v1202 = vadd.f32 %v1128, %v1201
    %v1203 = vpop.f32.mrf.mxu0
    %1204 = vmatprep.mubr.f32.mxu0 0.0
    %1205 = vmatmul.mubr.f32.gmra.mxu0 %v1133
    %v1206 = vpop.f32.mrf.mxu0
    %v1207 = vadd.f32 %v1128, %v1206
    %v1208 = vpop.f32.mrf.mxu0
    %1209 = vdwg.mxu0
    %v1210 = vmax.f32 %v1202, 0.0
    %v1211 = vmax.f32 %v1207, 0.0
    %v1212 = vld [vmem:[%s3] sm:$0xff]
    %v1213 = vld [vmem:[%s3 + $0x8] sm:$0xff]
    %v1214 = vld [vmem:[%s3 + $0x10] sm:$0xff]
    %v1215 = vld [vmem:[%s3 + $0x18] sm:$0xff]
    %v1216 = vld [vmem:[%s3 + $0x20] sm:$0xff]
    %v1217 = vld [vmem:[%s3 + $0x28] sm:$0xff]
    %v1218 = vld [vmem:[%s3 + $0x30] sm:$0xff]
    %v1219 = vld [vmem:[%s3 + $0x38] sm:$0xff]
    %v1220 = vlaneseq
    %v1221 = vshrl.u32 %v1220, 7
    %v1222 = vsub.s32 1, %v1221
    %v1223 = vrot.slane %v27, %v1222
    %vm1224 = vcmask 523264
    %v1226 = vsel %vm1224, %v1210, 0
    %v1229 = vsel %vm1224, %v1211, 0
    %1231 = vmatprep.subr.mxu0 0.0
    %1232 = vmatpush1.msra.mxu0 0.0
    %1233 = vmatprep.subr.mxu0 0.0
    %1234 = vmatpush1.msra.mxu0 0.0
    %1235 = vmatprep.subr.mxu0 0.0
    %1236 = vmatpush1.msra.mxu0 0.0
    %1237 = vmatprep.subr.mxu0 0.0
    %1238 = vmatpush1.msra.mxu0 0.0
    %1239 = vmatprep.subr.mxu0 0.0
    %1240 = vmatpush1.msra.mxu0 0.0
    %1241 = vmatprep.subr.mxu0 0.0
    %1242 = vmatpush1.msra.mxu0 0.0
    %1243 = vmatprep.subr.mxu0 0.0
    %1244 = vmatpush1.msra.mxu0 0.0
    %1245 = vmatprep.subr.mxu0 0.0
    %1246 = vmatpush1.msra.mxu0 0.0
    %1247 = vmatprep.subr.mxu0 0.0
    %1248 = vmatpush1.msra.mxu0 %v1219
    %1249 = vmatprep.subr.mxu0 0.0
    %1250 = vmatpush1.msra.mxu0 %v1218
    %1251 = vmatprep.subr.mxu0 0.0
    %1252 = vmatpush1.msra.mxu0 %v1217
    %1253 = vmatprep.subr.mxu0 0.0
    %1254 = vmatpush1.msra.mxu0 %v1216
    %1255 = vmatprep.subr.mxu0 0.0
    %1256 = vmatpush1.msra.mxu0 %v1215
    %1257 = vmatprep.subr.mxu0 0.0
    %1258 = vmatpush1.msra.mxu0 %v1214
    %1259 = vmatprep.subr.mxu0 0.0
    %1260 = vmatpush1.msra.mxu0 %v1213
    %1261 = vmatprep.subr.mxu0 0.0
    %1262 = vmatpush1.msra.mxu0 %v1212
    %1263 = vmatprep.subr.mxu0 0.0
    %1264 = vmatpush2.msra.mxu0 0.0
    %1265 = vmatprep.subr.mxu0 0.0
    %1266 = vmatpush2.msra.mxu0 0.0
    %1267 = vmatprep.subr.mxu0 0.0
    %1268 = vmatpush2.msra.mxu0 0.0
    %1269 = vmatprep.subr.mxu0 0.0
    %1270 = vmatpush2.msra.mxu0 0.0
    %1271 = vmatprep.subr.mxu0 0.0
    %1272 = vmatpush2.msra.mxu0 0.0
    %1273 = vmatprep.subr.mxu0 0.0
    %1274 = vmatpush2.msra.mxu0 0.0
    %1275 = vmatprep.subr.mxu0 0.0
    %1276 = vmatpush2.msra.mxu0 0.0
    %1277 = vmatprep.subr.mxu0 0.0
    %1278 = vmatpush2.msra.mxu0 0.0
    %1279 = vmatprep.subr.mxu0 0.0
    %1280 = vmatpush2.msra.mxu0 0.0
    %1281 = vmatprep.subr.mxu0 0.0
    %1282 = vmatpush2.msra.mxu0 0.0
    %1283 = vmatprep.subr.mxu0 0.0
    %1284 = vmatpush2.msra.mxu0 0.0
    %1285 = vmatprep.subr.mxu0 0.0
    %1286 = vmatpush2.msra.mxu0 0.0
    %1287 = vmatprep.subr.mxu0 0.0
    %1288 = vmatpush2.msra.mxu0 0.0
    %1289 = vmatprep.subr.mxu0 0.0
    %1290 = vmatpush2.msra.mxu0 0.0
    %1291 = vmatprep.subr.mxu0 0.0
    %1292 = vmatpush2.msra.mxu0 0.0
    %1293 = vmatprep.subr.mxu0 0.0
    %1294 = vmatpush2.msra.mxu0 0.0
    %1295 = vmatprep.mubr.f32.mxu0 0.0
    %1296 = vmatmul.mubr.f32.gmra.mxu0 %v1226
    %v1297 = vpop.f32.mrf.mxu0
    %v1298 = vadd.f32 %v1223, %v1297
    %v1299 = vpop.f32.mrf.mxu0
    %1300 = vmatprep.mubr.f32.mxu0 0.0
    %1301 = vmatmul.mubr.f32.gmra.mxu0 %v1229
    %v1302 = vpop.f32.mrf.mxu0
    %v1303 = vadd.f32 %v1223, %v1302
    %v1304 = vpop.f32.mrf.mxu0
    %1305 = vdwg.mxu0
    %v1306 = vadd.f32 %v1119, %v1298
    %v1307 = vadd.f32 %v1120, %v1303
    %v1308 = vsel %vm28, %v1306, 0.0
    %1309 = vadd.xlane.f32.xlu0 %v1308
    %v1310 = vpop.xlane.xlu0 %1309
    %v1311 = vsel %vm28, %v1307, 0.0
    %1312 = vadd.xlane.f32.xlu0 %v1311
    %v1313 = vpop.xlane.xlu0 %1312
    %v1314 = vmul.f32 %v1310, %v1074
    %v1315 = vmul.f32 %v1313, %v1074
    %v1316 = vsub.f32 %v1306, %v1314
    %v1317 = vsub.f32 %v1307, %v1315
    %v1318 = vmul.f32 %v1316, %v1316
    %v1319 = vmul.f32 %v1317, %v1317
    %v1320 = vsel %vm28, %v1318, 0.0
    %1321 = vadd.xlane.f32.xlu0 %v1320
    %v1322 = vpop.xlane.xlu0 %1321
    %v1323 = vsel %vm28, %v1319, 0.0
    %1324 = vadd.xlane.f32.xlu0 %v1323
    %v1325 = vpop.xlane.xlu0 %1324
    %v1326 = vmul.f32 %v1322, %v1074
    %v1327 = vmul.f32 %v1325, %v1074
    %v1328 = vrsqrt.pop %v1326
    %v1329 = vmul.f32 %v1326, %v1328
    %vm1330 = vcmp.eq.f32.partialorder %v1326, inf
    %v1331 = vsel %vm1330, %v1326, %v1329
    %vm1332 = vcmp.eq.f32.partialorder %v1326, 0.0
    %v1333 = vand.u32 %v1326, 2147483648
    %v1334 = vsel %vm1332, %v1333, %v1331
    %v1335 = vrsqrt.pop %v1327
    %v1336 = vmul.f32 %v1327, %v1335
    %vm1337 = vcmp.eq.f32.partialorder %v1327, inf
    %v1338 = vsel %vm1337, %v1327, %v1336
    %vm1339 = vcmp.eq.f32.partialorder %v1327, 0.0
    %v1340 = vand.u32 %v1327, 2147483648
    %v1341 = vsel %vm1339, %v1340, %v1338
    %v1342 = vadd.f32 %v1334, 1e-06
    %v1343 = vadd.f32 %v1341, 1e-06
    %v1344 = vrcp.pop %v1342
    %v1345 = vmul.f32 %v1316, %v1344
    %v1346 = vrcp.pop %v1343
    %v1347 = vmul.f32 %v1317, %v1346
    %v1348 = vlaneseq
    %v1349 = vshrl.u32 %v1348, 7
    %v1350 = vsub.s32 4, %v1349
    %v1351 = vrot.slane %v27, %v1350
    %v1352 = vmul.f32 %v1345, %v1351
    %v1353 = vmul.f32 %v1347, %v1351
    %v1354 = vlaneseq
    %v1355 = vshrl.u32 %v1354, 7
    %v1356 = vsub.s32 5, %v1355
    %v1357 = vrot.slane %v27, %v1356
    %v1358 = vadd.f32 %v1352, %v1357
    %v1359 = vadd.f32 %v1353, %v1357
    %1360 = vst.msk [vmem:[#allocation2] sm:$0xff] %vm28, %v1358
    %1361 = vst.msk [vmem:[#allocation2 + $0x8] sm:$0xff] %vm28, %v1359
    // Predicated region
    $region22: #{decoder_block.1} parent=1 // pred_check
      _
    $region23: #{decoder_block.1} parent=1 // pred_check_branch
      %1363 = sbr.rel (0) target = $region25
    $region24: #{decoder_block.1} parent=1 // pred_region
      %s1365 = ssub.s32 256, 256
      %1366 = vsyncadd [#allocation3], %s1365
      %s1367 = sshll.u32 [#allocation2], 4
      %s1368 = int_to_ptr.vmem [resolvable:$true] %s1367
      %1373 = dma.vmem_to_hbm [thread:$0]  %s1368, 256, %s5, [#allocation3], 128, 128, 8
    $region25: #{decoder_block.1} parent=1 // pred_fallthru
      _
    // Predicated region
    $region26: #{decoder_block.1} parent=1 // pred_check
      _
    $region27: #{decoder_block.1} parent=1 // pred_check_branch
      %1375 = sbr.rel (0) target = $region29
    $region28: #{decoder_block.1} parent=1 // pred_region
      %1376 = dma.done [#allocation3], 256
    $region29: #{decoder_block.1} parent=1 // pred_fallthru
      _
    %1377 = vsyncpa [#allocation3], 1

</llo_original>
